<compile_context>
chip_gen: v7x
topology: tpu7x:2x2x1
jax: 0.10.0
libtpu: 0.0.40
codegen_flags: <defaults>
</compile_context>

<pallas_src>
import jax
import jax.numpy as jnp
from jax.experimental import pallas as pl
from jax.experimental.pallas import tpu as pltpu

T_SCALE = 0.1
LANE = 128          # TPU lane width; all weight tiles are padded to 128x128.


def _bdot(a, b):
    """MXU matmul with bf16 operands and f32 accumulation (reference helper)."""
    return jnp.dot(a.astype(jnp.bfloat16), b.astype(jnp.bfloat16),
                   preferred_element_type=jnp.float32)


def graphnet_kernel(x_ref, s3_ref, sel_ref, w_ref, v_ref, out_ref):
    """One group of G graphs (GN = G*N node rows) per grid step.

    x_ref  : [1, GN, 128] f32   node features (lanes >= H are zero)
    s3_ref : [1, GN, GN]  bf16  block-diagonal S^3 for the group
    sel_ref: [G, GN]      f32   segment matrix (one-hot node -> graph blocks)
    w_ref  : [7*128, 128] bf16  packed 128x128 weight tiles
    v_ref  : [16, 128]    f32   packed bias / PReLU / gate-weight rows
    out_ref: [1, G, 128]  f32   lane-dense output slab (first OUT lanes valid)
    """
    bf16 = jnp.bfloat16
    f32 = jnp.float32

    def w(i):                  # i-th padded 128x128 weight tile (bf16)
        return w_ref[i * LANE:(i + 1) * LANE, :]

    bl1 = v_ref[0:1, :]        # lin1 bias
    bsg = v_ref[1:2, :]        # SGConv linear bias
    ba1 = v_ref[2:3, :]        # act1 bias
    bg1 = v_ref[3:4, :]        # gate Linear(2H,H) bias
    ag = v_ref[4:5, :]         # gate PReLU(H) slopes
    wg2 = v_ref[5:6, :]        # gate Linear(H,1) weight as a row vector
    bp = v_ref[6:7, :]         # proj bias
    al1 = v_ref[7:8, :]        # lin1 PReLU scalar slope (broadcast row)
    aa1 = v_ref[8:9, :]        # act1 PReLU scalar slope (broadcast row)

    x = x_ref[0]               # [GN, 128] f32 (raw x; (1-t) folded into weights)
    xb = x.astype(bf16)
    s3 = s3_ref[0]             # [GN, GN] bf16
    sel = sel_ref[...]         # [G, GN] f32

    # ---- lin1 + PReLU ----
    h = jnp.dot(xb, w(0), preferred_element_type=f32) + bl1
    x1 = jnp.where(h >= 0, h, al1 * h)                               # [GN, 128]

    # ---- SGConv, K=3: one block-diag S^3 matmul, then linear ----
    z = jnp.dot(s3, x1.astype(bf16), preferred_element_type=f32)
    h = jnp.dot(z.astype(bf16), w(1), preferred_element_type=f32) + bsg

    # ---- act1: Linear(2H, H) + PReLU ----
    h = jnp.dot(h.astype(bf16), w(2), preferred_element_type=f32) + ba1
    x1 = jnp.where(h >= 0, h, aa1 * h)                               # [GN, 128]
    x1b = x1.astype(bf16)

    # ---- GlobalAttention gate: Linear(2H,H) on cat(x,x1), concat-free ----
    g = (jnp.dot(xb, w(3), preferred_element_type=f32)
         + jnp.dot(x1b, w(4), preferred_element_type=f32) + bg1)
    g = jnp.where(g >= 0, g, ag * g)                                 # [GN, 128]
    # Linear(H, 1) as a lane reduction; the final bias cancels in softmax.
    gate = jnp.sum(g * wg2, axis=1, keepdims=True)                   # [GN, 1]

    # ---- per-graph softmax + attention pooling via segment matmuls ----
    # Shift by the group-global max (softmax is shift-invariant).
    m = jnp.max(gate, axis=0, keepdims=True)
    e = jnp.exp(gate - m)                                            # [GN, 1] f32
    den = jnp.dot(sel, e, preferred_element_type=f32)                # [G, 1]
    num_x = jnp.dot(sel, e * x, preferred_element_type=f32)          # [G, 128]
    num_x1 = jnp.dot(sel, e * x1, preferred_element_type=f32)        # [G, 128]
    inv = pl.reciprocal(den, approx=True)                            # EUP, ~free
    rx = num_x * inv
    rx1 = num_x1 * inv

    # ---- proj: Linear(2H, out), concat-free, lane-dense [G,128] store ----
    out = (jnp.dot(rx.astype(bf16), w(5), preferred_element_type=f32)
           + jnp.dot(rx1.astype(bf16), w(6), preferred_element_type=f32) + bp)
    out_ref[0] = out.astype(out_ref.dtype)


def pack_params(params):
    """Pack the 15 small parameter arrays into (bf16 weight slab, f32 row slab)."""
    (wl1, bl1, al1, wsg, bsg, wa1, ba1, aa1,
     wg1, bg1, ag, wg2, bg2, wp, bp) = params
    h = wl1.shape[0]
    scale = 1.0 - T_SCALE

    def pad_w(w):            # [in, out] -> [128, 128], zero padded
        return jnp.zeros((LANE, LANE), jnp.float32).at[:w.shape[0], :w.shape[1]].set(w)

    def pad_row(r):          # [1, k] -> [1, 128], zero padded
        return jnp.zeros((1, LANE), jnp.float32).at[:, :r.shape[1]].set(r)

    # (1 - t) folded into the x-consuming weight halves: (s*x)@W == x@(s*W).
    w_slab = jnp.concatenate(
        [pad_w(wl1 * scale), pad_w(wsg), pad_w(wa1),
         pad_w(wg1[:h] * scale), pad_w(wg1[h:]),      # gate Linear(2H,H) split
         pad_w(wp[:h] * scale), pad_w(wp[h:])],       # proj Linear(2H,out) split
        axis=0).astype(jnp.bfloat16)                                  # [896, 128]

    full = lambda v: jnp.full((1, LANE), v, jnp.float32)
    v_slab = jnp.concatenate(
        [pad_row(bl1), pad_row(bsg), pad_row(ba1), pad_row(bg1),
         pad_row(ag), pad_row(wg2.T), pad_row(bp),
         full(al1[0, 0]), full(aa1[0, 0]),
         jnp.zeros((7, LANE), jnp.float32)], axis=0)                  # [16, 128]
    # gate_nn's final bias bg2 is intentionally dropped (cancels in softmax).
    return w_slab, v_slab


def _default_num_steps():
    """2 grid steps keep both v7x TensorCores busy; 1 full-tile step otherwise."""
    try:
        if "v7" in jax.devices()[0].device_kind.lower():
            return 2
    except Exception:
        pass
    return 1


def graphnet_forward(x, s, params, num_steps=None):
    """x: [B, N, H] f32, s: [B, N, N] f32 (GCN-normalized adjacency) -> [B, out]."""
    B, N, H = x.shape
    out_ch = params[-1].shape[-1]
    if num_steps is None:
        num_steps = _default_num_steps()
    if B % num_steps != 0:
        num_steps = 1
    gper = B // num_steps          # graphs per grid step
    gn = gper * N                  # node rows per grid step

    # Whole-batch feature slab, grouped per grid step: [num_steps, gn, 128].
    x_pad = jnp.zeros((B, N, LANE), jnp.float32).at[:, :, :H].set(x)
    x_grp = x_pad.reshape(num_steps, gn, LANE)

    # Precompute S^3 (no dependence on x) and lay it out block-diagonally so the
    # whole group propagates in ONE MXU matmul.  Pre-cast to bf16 (MXU operand only).
    s3 = jnp.matmul(jnp.matmul(s, s), s)                              # [B, N, N] f32
    s3_bd = jnp.zeros((num_steps, gn, gn), jnp.float32)
    for st in range(num_steps):
        for g in range(gper):
            b = st * gper + g
            s3_bd = s3_bd.at[st, g * N:(g + 1) * N, g * N:(g + 1) * N].set(s3[b])
    s3_bd = s3_bd.astype(jnp.bfloat16)

    # Segment matrix: one-hot blocks of N nodes per graph, [gper, gn].
    sel = jnp.kron(jnp.eye(gper, dtype=jnp.float32),
                   jnp.ones((1, N), jnp.float32))

    w_slab, v_slab = pack_params(params)
    w_rows, v_rows = w_slab.shape[0], v_slab.shape[0]

    flops = num_steps * (5 * 2 * gn * LANE * LANE        # five [gn,128]@[128,128]
                         + 2 * gn * gn * LANE            # block-diag S^3 hop
                         + 2 * gper * gn * (2 * LANE + 1)   # pooling matmuls
                         + 2 * 2 * gper * LANE * LANE)      # proj halves
    bytes_accessed = int(x_grp.size * 4 + s3_bd.size * 2 + sel.size * 4
                         + w_slab.size * 2 + v_slab.size * 4
                         + num_steps * gper * LANE * 4)

    out = pl.pallas_call(
        graphnet_kernel,
        grid=(num_steps,),
        in_specs=[
            pl.BlockSpec((1, gn, LANE), lambda b: (b, 0, 0)),      # x slab
            pl.BlockSpec((1, gn, gn), lambda b: (b, 0, 0)),        # block-diag S^3
            pl.BlockSpec((gper, gn), lambda b: (0, 0)),            # segment matrix
            pl.BlockSpec((w_rows, LANE), lambda b: (0, 0)),        # weight slab
            pl.BlockSpec((v_rows, LANE), lambda b: (0, 0)),        # bias rows
        ],
        out_specs=pl.BlockSpec((1, gper, LANE), lambda b: (b, 0, 0)),
        out_shape=jax.ShapeDtypeStruct((num_steps, gper, LANE), jnp.float32),
        compiler_params=pltpu.CompilerParams(
            dimension_semantics=("parallel",),
            vmem_limit_bytes=32 * 1024 * 1024),
        cost_estimate=pl.CostEstimate(flops=flops,
                                      transcendentals=num_steps * (gn + gper),
                                      bytes_accessed=bytes_accessed),
    )(x_grp, s3_bd, sel, w_slab, v_slab)

    return out.reshape(B, LANE)[:, :out_ch]


def graphnet_ref(x, s, params):
    """Pure-JAX reference for one graph, following the PyTorch forward in eval
    mode (t fixed to T_SCALE).  Linear layers use bf16 operands / f32
    accumulation like the kernel's MXU; softmax / pooling are exact f32."""
    (wl1, bl1, al1, wsg, bsg, wa1, ba1, aa1,
     wg1, bg1, ag, wg2, bg2, wp, bp) = params
    prelu = lambda v, a: jnp.where(v >= 0, v, a * v)
    xs = x * (1.0 - T_SCALE)
    x1 = prelu(_bdot(xs, wl1) + bl1, al1)
    s3 = s @ s @ s
    z = _bdot(_bdot(s3, x1), wsg) + bsg
    x1 = prelu(_bdot(z, wa1) + ba1, aa1)
    feats = jnp.concatenate([xs, x1], axis=1)
    g = prelu(_bdot(feats, wg1) + bg1, ag)
    gate = g @ wg2 + bg2
    alpha = jax.nn.softmax(gate, axis=0)
    reads = jnp.sum(alpha * feats, axis=0, keepdims=True)
    return _bdot(reads, wp) + bp


def normalized_adjacency(edge_index, num_nodes):
    """Dense S = D^-1/2 (A + I) D^-1/2, A[dst, src] += 1 (GCN normalization)."""
    src, dst = edge_index[0], edge_index[1]
    a = jnp.zeros((num_nodes, num_nodes), jnp.float32)
    a = a.at[dst, src].add(1.0)
    a = a + jnp.eye(num_nodes, dtype=jnp.float32)   # add_self_loops
    deg = a.sum(axis=1)
    dinv = jnp.where(deg > 0, 1.0 / jnp.sqrt(deg), 0.0)
    return dinv[:, None] * a * dinv[None, :]


def init_params(key, hidden, out_channels):
    """Deterministic synthetic parameters. Linear weights stored as [in, out]."""
    h, h2 = hidden, 2 * hidden
    ks = jax.random.split(key, 8)

    def lin(k, fan_in, fan_out):
        bound = 1.0 / jnp.sqrt(fan_in)
        kw, kb = jax.random.split(k)
        w = jax.random.uniform(kw, (fan_in, fan_out), jnp.float32, -bound, bound)
        b = jax.random.uniform(kb, (1, fan_out), jnp.float32, -bound, bound)
        return w, b

    wl1, bl1 = lin(ks[0], h, h)
    al1 = jnp.full((1, 1), 0.25, jnp.float32)          # PReLU() default
    wsg, bsg = lin(ks[1], h, h2)                       # SGConv linear
    wa1, ba1 = lin(ks[2], h2, h)
    aa1 = jnp.full((1, 1), 0.25, jnp.float32)
    wg1, bg1 = lin(ks[3], h2, h)                       # gate_nn Linear(2H, H)
    ag = jnp.full((1, h), 0.25, jnp.float32)           # PReLU(hidden)
    wg2, bg2 = lin(ks[4], h, 1)                        # gate_nn Linear(H, 1)
    wp, bp = lin(ks[5], h2, out_channels)              # proj
    return (wl1, bl1, al1, wsg, bsg, wa1, ba1, aa1,
            wg1, bg1, ag, wg2, bg2, wp, bp)


if __name__ == "__main__":
    B = 8                  # graphs in the batch (B*N == 128 rows -> one MXU tile)
    N = 16                 # nodes per graph
    HIDDEN = 32            # hidden_channels (== in_channels for the SGC path)
    OUT = 8                # out_channels

    key = jax.random.PRNGKey(0)
    kx, kp = jax.random.split(key)

    x = jax.random.normal(kx, (B, N, HIDDEN), jnp.float32)

    # B distinct graphs: undirected ring + one graph-specific chord edge.
    idx = jnp.arange(N, dtype=jnp.int32)
    nxt = (idx + 1) % N
    s_list = []
    for b in range(B):
        c = (2 + b) % N
        chord_src = jnp.array([0, c], dtype=jnp.int32)
        chord_dst = jnp.array([c, 0], dtype=jnp.int32)
        edge_index = jnp.stack(
            [jnp.concatenate([idx, nxt, chord_src]),
             jnp.concatenate([nxt, idx, chord_dst])], axis=0)
        s_list.append(normalized_adjacency(edge_index, N))
    s = jnp.stack(s_list, axis=0)                       # [B, N, N]

    params = init_params(kp, HIDDEN, OUT)

    out = graphnet_forward(x, s, params)                # [B, OUT]
    jax.block_until_ready(out)

    ref = jnp.concatenate([graphnet_ref(x[b], s[b], params) for b in range(B)],
                          axis=0)
    assert out.shape == (B, OUT)
    # Tolerance covers bf16 MXU operand rounding (scale folded into weights in
    # the kernel, applied to x in the reference — algebraically identical).
    assert jnp.allclose(out, ref, atol=1e-2, rtol=1e-2), (out, ref)
    print("KERNEL_OK")
</pallas_src>

<mosaic_0001>
module attributes {stable_mosaic.version = 11 : i64} {
  func.func @graphnet_kernel(%arg0: i32, %arg1: memref<1x128x128xf32, #tpu.memory_space<vmem>>, %arg2: memref<1x128x128xbf16, #tpu.memory_space<vmem>>, %arg3: memref<8x128xf32, #tpu.memory_space<vmem>>, %arg4: memref<896x128xbf16, #tpu.memory_space<vmem>>, %arg5: memref<16x128xf32, #tpu.memory_space<vmem>>, %arg6: memref<1x8x128xf32, #tpu.memory_space<vmem>>) attributes {dimension_semantics = [#tpu.dimension_semantics<parallel>], iteration_bounds = array<i64: 1>, scalar_prefetch = 0 : i64, scratch_operands = 0 : i64, tpu.core_type = #tpu.core_type<tc>, window_params = [{transform_indices = @transform_0, window_bounds = array<i64: 1, 128, 128>}, {transform_indices = @transform_1, window_bounds = array<i64: 1, 128, 128>}, {pipeline_mode = #tpu.pipeline_mode<synchronous>, transform_indices = @transform_2, window_bounds = array<i64: 8, 128>}, {pipeline_mode = #tpu.pipeline_mode<synchronous>, transform_indices = @transform_3, window_bounds = array<i64: 896, 128>}, {pipeline_mode = #tpu.pipeline_mode<synchronous>, transform_indices = @transform_4, window_bounds = array<i64: 16, 128>}, {transform_indices = @transform_5, window_bounds = array<i64: 1, 8, 128>}]} {
    %c0 = arith.constant 0 : index
    %c0_0 = arith.constant 0 : index
    %0 = vector.load %arg5[%c0, %c0_0] : memref<16x128xf32, #tpu.memory_space<vmem>>, vector<1x128xf32>
    %c1 = arith.constant 1 : index
    %c0_1 = arith.constant 0 : index
    %1 = vector.load %arg5[%c1, %c0_1] : memref<16x128xf32, #tpu.memory_space<vmem>>, vector<1x128xf32>
    %c2 = arith.constant 2 : index
    %c0_2 = arith.constant 0 : index
    %2 = vector.load %arg5[%c2, %c0_2] : memref<16x128xf32, #tpu.memory_space<vmem>>, vector<1x128xf32>
    %c3 = arith.constant 3 : index
    %c0_3 = arith.constant 0 : index
    %3 = vector.load %arg5[%c3, %c0_3] : memref<16x128xf32, #tpu.memory_space<vmem>>, vector<1x128xf32>
    %c4 = arith.constant 4 : index
    %c0_4 = arith.constant 0 : index
    %4 = vector.load %arg5[%c4, %c0_4] : memref<16x128xf32, #tpu.memory_space<vmem>>, vector<1x128xf32>
    %c5 = arith.constant 5 : index
    %c0_5 = arith.constant 0 : index
    %5 = vector.load %arg5[%c5, %c0_5] : memref<16x128xf32, #tpu.memory_space<vmem>>, vector<1x128xf32>
    %c6 = arith.constant 6 : index
    %c0_6 = arith.constant 0 : index
    %6 = vector.load %arg5[%c6, %c0_6] : memref<16x128xf32, #tpu.memory_space<vmem>>, vector<1x128xf32>
    %c7 = arith.constant 7 : index
    %c0_7 = arith.constant 0 : index
    %7 = vector.load %arg5[%c7, %c0_7] : memref<16x128xf32, #tpu.memory_space<vmem>>, vector<1x128xf32>
    %c8 = arith.constant 8 : index
    %c0_8 = arith.constant 0 : index
    %8 = vector.load %arg5[%c8, %c0_8] : memref<16x128xf32, #tpu.memory_space<vmem>>, vector<1x128xf32>
    %c0_9 = arith.constant 0 : index
    %c0_10 = arith.constant 0 : index
    %c0_11 = arith.constant 0 : index
    %9 = vector.load %arg1[%c0_9, %c0_10, %c0_11] : memref<1x128x128xf32, #tpu.memory_space<vmem>>, vector<1x128x128xf32>
    %10 = vector.shape_cast %9 : vector<1x128x128xf32> to vector<128x128xf32>
    %11 = arith.truncf %10 : vector<128x128xf32> to vector<128x128xbf16>
    %c0_12 = arith.constant 0 : index
    %c0_13 = arith.constant 0 : index
    %c0_14 = arith.constant 0 : index
    %12 = vector.load %arg2[%c0_12, %c0_13, %c0_14] : memref<1x128x128xbf16, #tpu.memory_space<vmem>>, vector<1x128x128xbf16>
    %13 = vector.shape_cast %12 : vector<1x128x128xbf16> to vector<128x128xbf16>
    %c0_15 = arith.constant 0 : index
    %c0_16 = arith.constant 0 : index
    %14 = vector.load %arg3[%c0_15, %c0_16] : memref<8x128xf32, #tpu.memory_space<vmem>>, vector<8x128xf32>
    %c0_17 = arith.constant 0 : index
    %c0_18 = arith.constant 0 : index
    %15 = vector.load %arg4[%c0_17, %c0_18] : memref<896x128xbf16, #tpu.memory_space<vmem>>, vector<128x128xbf16>
    %cst = arith.constant dense<0.000000e+00> : vector<128x128xf32>
    %16 = tpu.matmul %11, %15, %cst {dimension_numbers = #tpu.dot_dimension_numbers<[1], [0], [0], [1], [0, 0, 1, 1], [], []>} : vector<128x128xbf16>, vector<128x128xbf16>, vector<128x128xf32> -> vector<128x128xf32>
    %17 = vector.broadcast %0 : vector<1x128xf32> to vector<128x128xf32>
    %18 = arith.addf %16, %17 : vector<128x128xf32>
    %cst_19 = arith.constant 0.000000e+00 : f32
    %19 = vector.broadcast %cst_19 : f32 to vector<128x128xf32>
    %20 = arith.cmpf oge, %18, %19 : vector<128x128xf32>
    %21 = vector.broadcast %7 : vector<1x128xf32> to vector<128x128xf32>
    %22 = arith.mulf %21, %18 : vector<128x128xf32>
    %23 = arith.select %20, %18, %22 : vector<128x128xi1>, vector<128x128xf32>
    %24 = arith.truncf %23 : vector<128x128xf32> to vector<128x128xbf16>
    %cst_20 = arith.constant dense<0.000000e+00> : vector<128x128xf32>
    %25 = tpu.matmul %13, %24, %cst_20 {dimension_numbers = #tpu.dot_dimension_numbers<[1], [0], [0], [1], [0, 0, 1, 1], [], []>} : vector<128x128xbf16>, vector<128x128xbf16>, vector<128x128xf32> -> vector<128x128xf32>
    %26 = arith.truncf %25 : vector<128x128xf32> to vector<128x128xbf16>
    %c128 = arith.constant 128 : index
    %c0_21 = arith.constant 0 : index
    %27 = vector.load %arg4[%c128, %c0_21] : memref<896x128xbf16, #tpu.memory_space<vmem>>, vector<128x128xbf16>
    %cst_22 = arith.constant dense<0.000000e+00> : vector<128x128xf32>
    %28 = tpu.matmul %26, %27, %cst_22 {dimension_numbers = #tpu.dot_dimension_numbers<[1], [0], [0], [1], [0, 0, 1, 1], [], []>} : vector<128x128xbf16>, vector<128x128xbf16>, vector<128x128xf32> -> vector<128x128xf32>
    %29 = vector.broadcast %1 : vector<1x128xf32> to vector<128x128xf32>
    %30 = arith.addf %28, %29 : vector<128x128xf32>
    %31 = arith.truncf %30 : vector<128x128xf32> to vector<128x128xbf16>
    %c256 = arith.constant 256 : index
    %c0_23 = arith.constant 0 : index
    %32 = vector.load %arg4[%c256, %c0_23] : memref<896x128xbf16, #tpu.memory_space<vmem>>, vector<128x128xbf16>
    %cst_24 = arith.constant dense<0.000000e+00> : vector<128x128xf32>
    %33 = tpu.matmul %31, %32, %cst_24 {dimension_numbers = #tpu.dot_dimension_numbers<[1], [0], [0], [1], [0, 0, 1, 1], [], []>} : vector<128x128xbf16>, vector<128x128xbf16>, vector<128x128xf32> -> vector<128x128xf32>
    %34 = vector.broadcast %2 : vector<1x128xf32> to vector<128x128xf32>
    %35 = arith.addf %33, %34 : vector<128x128xf32>
    %cst_25 = arith.constant 0.000000e+00 : f32
    %36 = vector.broadcast %cst_25 : f32 to vector<128x128xf32>
    %37 = arith.cmpf oge, %35, %36 : vector<128x128xf32>
    %38 = vector.broadcast %8 : vector<1x128xf32> to vector<128x128xf32>
    %39 = arith.mulf %38, %35 : vector<128x128xf32>
    %40 = arith.select %37, %35, %39 : vector<128x128xi1>, vector<128x128xf32>
    %41 = arith.truncf %40 : vector<128x128xf32> to vector<128x128xbf16>
    %c384 = arith.constant 384 : index
    %c0_26 = arith.constant 0 : index
    %42 = vector.load %arg4[%c384, %c0_26] : memref<896x128xbf16, #tpu.memory_space<vmem>>, vector<128x128xbf16>
    %cst_27 = arith.constant dense<0.000000e+00> : vector<128x128xf32>
    %43 = tpu.matmul %11, %42, %cst_27 {dimension_numbers = #tpu.dot_dimension_numbers<[1], [0], [0], [1], [0, 0, 1, 1], [], []>} : vector<128x128xbf16>, vector<128x128xbf16>, vector<128x128xf32> -> vector<128x128xf32>
    %c512 = arith.constant 512 : index
    %c0_28 = arith.constant 0 : index
    %44 = vector.load %arg4[%c512, %c0_28] : memref<896x128xbf16, #tpu.memory_space<vmem>>, vector<128x128xbf16>
    %cst_29 = arith.constant dense<0.000000e+00> : vector<128x128xf32>
    %45 = tpu.matmul %41, %44, %cst_29 {dimension_numbers = #tpu.dot_dimension_numbers<[1], [0], [0], [1], [0, 0, 1, 1], [], []>} : vector<128x128xbf16>, vector<128x128xbf16>, vector<128x128xf32> -> vector<128x128xf32>
    %46 = arith.addf %43, %45 : vector<128x128xf32>
    %47 = vector.broadcast %3 : vector<1x128xf32> to vector<128x128xf32>
    %48 = arith.addf %46, %47 : vector<128x128xf32>
    %cst_30 = arith.constant 0.000000e+00 : f32
    %49 = vector.broadcast %cst_30 : f32 to vector<128x128xf32>
    %50 = arith.cmpf oge, %48, %49 : vector<128x128xf32>
    %51 = vector.broadcast %4 : vector<1x128xf32> to vector<128x128xf32>
    %52 = arith.mulf %51, %48 : vector<128x128xf32>
    %53 = arith.select %50, %48, %52 : vector<128x128xi1>, vector<128x128xf32>
    %54 = vector.broadcast %5 : vector<1x128xf32> to vector<128x128xf32>
    %55 = arith.mulf %53, %54 : vector<128x128xf32>
    %cst_31 = arith.constant dense<0.000000e+00> : vector<128xf32>
    %56 = vector.multi_reduction <add>, %55, %cst_31 [1] : vector<128x128xf32> to vector<128xf32>
    %57 = vector.shape_cast %56 : vector<128xf32> to vector<128x1xf32>
    %cst_32 = arith.constant dense<0xFF800000> : vector<1xf32>
    %58 = vector.multi_reduction <maximumf>, %57, %cst_32 [0] : vector<128x1xf32> to vector<1xf32>
    %59 = vector.shape_cast %58 : vector<1xf32> to vector<1x1xf32>
    %60 = vector.broadcast %59 : vector<1x1xf32> to vector<128x1xf32>
    %61 = arith.subf %57, %60 : vector<128x1xf32>
    %62 = math.exp %61 : vector<128x1xf32>
    %cst_33 = arith.constant dense<0.000000e+00> : vector<8x1xf32>
    %63 = tpu.matmul %14, %62, %cst_33 {dimension_numbers = #tpu.dot_dimension_numbers<[1], [0], [0], [1], [0, 0, 1, 1], [], []>} : vector<8x128xf32>, vector<128x1xf32>, vector<8x1xf32> -> vector<8x1xf32>
    %64 = vector.broadcast %62 : vector<128x1xf32> to vector<128x128xf32>
    %65 = arith.mulf %64, %10 : vector<128x128xf32>
    %cst_34 = arith.constant dense<0.000000e+00> : vector<8x128xf32>
    %66 = tpu.matmul %14, %65, %cst_34 {dimension_numbers = #tpu.dot_dimension_numbers<[1], [0], [0], [1], [0, 0, 1, 1], [], []>} : vector<8x128xf32>, vector<128x128xf32>, vector<8x128xf32> -> vector<8x128xf32>
    %67 = vector.broadcast %62 : vector<128x1xf32> to vector<128x128xf32>
    %68 = arith.mulf %67, %40 : vector<128x128xf32>
    %cst_35 = arith.constant dense<0.000000e+00> : vector<8x128xf32>
    %69 = tpu.matmul %14, %68, %cst_35 {dimension_numbers = #tpu.dot_dimension_numbers<[1], [0], [0], [1], [0, 0, 1, 1], [], []>} : vector<8x128xf32>, vector<128x128xf32>, vector<8x128xf32> -> vector<8x128xf32>
    %70 = tpu.reciprocal %63 {approx = true} : vector<8x1xf32> -> vector<8x1xf32>
    %71 = vector.broadcast %70 : vector<8x1xf32> to vector<8x128xf32>
    %72 = arith.mulf %66, %71 : vector<8x128xf32>
    %73 = vector.broadcast %70 : vector<8x1xf32> to vector<8x128xf32>
    %74 = arith.mulf %69, %73 : vector<8x128xf32>
    %75 = arith.truncf %72 : vector<8x128xf32> to vector<8x128xbf16>
    %c640 = arith.constant 640 : index
    %c0_36 = arith.constant 0 : index
    %76 = vector.load %arg4[%c640, %c0_36] : memref<896x128xbf16, #tpu.memory_space<vmem>>, vector<128x128xbf16>
    %cst_37 = arith.constant dense<0.000000e+00> : vector<8x128xf32>
    %77 = tpu.matmul %75, %76, %cst_37 {dimension_numbers = #tpu.dot_dimension_numbers<[1], [0], [0], [1], [0, 0, 1, 1], [], []>} : vector<8x128xbf16>, vector<128x128xbf16>, vector<8x128xf32> -> vector<8x128xf32>
    %78 = arith.truncf %74 : vector<8x128xf32> to vector<8x128xbf16>
    %c768 = arith.constant 768 : index
    %c0_38 = arith.constant 0 : index
    %79 = vector.load %arg4[%c768, %c0_38] : memref<896x128xbf16, #tpu.memory_space<vmem>>, vector<128x128xbf16>
    %cst_39 = arith.constant dense<0.000000e+00> : vector<8x128xf32>
    %80 = tpu.matmul %78, %79, %cst_39 {dimension_numbers = #tpu.dot_dimension_numbers<[1], [0], [0], [1], [0, 0, 1, 1], [], []>} : vector<8x128xbf16>, vector<128x128xbf16>, vector<8x128xf32> -> vector<8x128xf32>
    %81 = arith.addf %77, %80 : vector<8x128xf32>
    %82 = vector.broadcast %6 : vector<1x128xf32> to vector<8x128xf32>
    %83 = arith.addf %81, %82 : vector<8x128xf32>
    %c0_40 = arith.constant 0 : index
    %c0_41 = arith.constant 0 : index
    %c0_42 = arith.constant 0 : index
    %84 = vector.load %arg6[%c0_40, %c0_41, %c0_42] : memref<1x8x128xf32, #tpu.memory_space<vmem>>, vector<1x8x128xf32>
    %85 = vector.shape_cast %84 : vector<1x8x128xf32> to vector<8x128xf32>
    %86 = vector.shape_cast %83 : vector<8x128xf32> to vector<1x8x128xf32>
    tpu.vector_store %arg6[%c0_40, %c0_41, %c0_42], %86 {strides = array<i32>} : memref<1x8x128xf32, #tpu.memory_space<vmem>>, vector<1x8x128xf32>,
    return
  }
  func.func @transform_0(%arg0: i32) -> (i32, i32, i32) {
    %c0_i32 = arith.constant 0 : i32
    %c0_i32_0 = arith.constant 0 : i32
    %c0_i32_1 = arith.constant 0 : i32
    return %arg0, %c0_i32, %c0_i32_0 : i32, i32, i32
  }
  func.func @transform_1(%arg0: i32) -> (i32, i32, i32) {
    %c0_i32 = arith.constant 0 : i32
    %c0_i32_0 = arith.constant 0 : i32
    %c0_i32_1 = arith.constant 0 : i32
    return %arg0, %c0_i32, %c0_i32_0 : i32, i32, i32
  }
  func.func @transform_2(%arg0: i32) -> (i32, i32) {
    %c0_i32 = arith.constant 0 : i32
    %c0_i32_0 = arith.constant 0 : i32
    %c0_i32_1 = arith.constant 0 : i32
    return %c0_i32, %c0_i32_0 : i32, i32
  }
  func.func @transform_3(%arg0: i32) -> (i32, i32) {
    %c0_i32 = arith.constant 0 : i32
    %c0_i32_0 = arith.constant 0 : i32
    %c0_i32_1 = arith.constant 0 : i32
    return %c0_i32, %c0_i32_0 : i32, i32
  }
  func.func @transform_4(%arg0: i32) -> (i32, i32) {
    %c0_i32 = arith.constant 0 : i32
    %c0_i32_0 = arith.constant 0 : i32
    %c0_i32_1 = arith.constant 0 : i32
    return %c0_i32, %c0_i32_0 : i32, i32
  }
  func.func @transform_5(%arg0: i32) -> (i32, i32, i32) {
    %c0_i32 = arith.constant 0 : i32
    %c0_i32_0 = arith.constant 0 : i32
    %c0_i32_1 = arith.constant 0 : i32
    return %arg0, %c0_i32, %c0_i32_0 : i32, i32, i32
  }
}

</mosaic_0001>

<llo_original>
// kernel: tpu_custom_call.1
$region0: #{tpu_custom_call.1}
  #allocation0 [shape = 'u32[]', space=smem, size = 0x4, offset = 0x4, fixed_abs, tag = 'smem constant byte address 0x4 - core index']
  #allocation1 [shape = 'u32[144,128]{1,0:T(1,128)}', space=vmem, size = 0x12000, scoped, tag = 'internal scratch']
  %s0 = inlined_call_operand.hbm [shape: f32[1,128,128], index: 0, kind: input, shape index: {}]
  %s1 = inlined_call_operand.hbm [shape: bf16[1,128,128], index: 1, kind: input, shape index: {}]
  %s2 = inlined_call_operand.hbm [shape: f32[8,128], index: 2, kind: input, shape index: {}]
  %s3 = inlined_call_operand.hbm [shape: bf16[896,128], index: 3, kind: input, shape index: {}]
  %s4 = inlined_call_operand.hbm [shape: f32[16,128], index: 4, kind: input, shape index: {}]
  %s5 = inlined_call_operand.hbm [shape: f32[1,8,128], index: 5, kind: output, shape index: {}]
  %s6 = sld [smem:[#allocation0]]
  $region50: #{tpu_custom_call.1} parent=0
    _
  %s8 = ssub.s32 1, %s6
  %s9 = scalar_select 0, %s8, %s6
  $region1: #{tpu_custom_call.1} parent=0
    #allocation2 [shape = 'u8[65536]{0}', space=vmem, size = 0x10000, scoped, tag = 'input window, operand 0, single buffered']
    #allocation3 [shape = 's32[1]{0}', space=sflag, size = 0x4, scoped, tag = 'scoped memory for tpu_custom_call.1']
    #allocation4 [shape = 's32[1]{0}', space=sflag, size = 0x4, scoped, tag = 'scoped memory for tpu_custom_call.1']
    #allocation5 [shape = 'u8[32768]{0}', space=vmem, size = 0x8000, scoped, tag = 'input window, operand 1, single buffered']
    #allocation6 [shape = 's32[1]{0}', space=sflag, size = 0x4, scoped, tag = 'scoped memory for tpu_custom_call.1']
    #allocation7 [shape = 'u8[4096]{0}', space=vmem, size = 0x1000, scoped, tag = 'input window, operand 2, single buffered']
    #allocation8 [shape = 'u8[229376]{0}', space=vmem, size = 0x38000, scoped, tag = 'input window, operand 3, single buffered']
    #allocation9 [shape = 's32[1]{0}', space=sflag, size = 0x4, scoped, tag = 'scoped memory for tpu_custom_call.1']
    #allocation10 [shape = 'u8[8192]{0}', space=vmem, size = 0x2000, scoped, tag = 'input window, operand 4, single buffered']
    #allocation11 [shape = 'u8[4096]{0}', space=vmem, size = 0x1000, scoped, tag = 'output window, operand 0, single buffered']
    %10 = vsyncpa [#allocation3], 0
    %11 = vsyncpa [#allocation6], 0
    %12 = vsyncpa [#allocation9], 0
    %13 = vsyncpa [#allocation4], 0
    // Predicated region
    $region2: #{tpu_custom_call.1} parent=1 // pred_check
      _
    $region3: #{tpu_custom_call.1} parent=1 // pred_check_branch
      %15 = sbr.rel (0) target = $region5
    $region4: #{tpu_custom_call.1} parent=1 // pred_region
      %s17 = ssub.s32 2048, 2048
      %18 = vsyncadd [#allocation3], %s17
      %s19 = sshll.u32 [#allocation2], 4
      %s20 = int_to_ptr.vmem [resolvable:$true] %s19
      %25 = dma.hbm_to_vmem [thread:$0]  %s0, 2048, %s20, [#allocation3], 128, 128, 8
    $region5: #{tpu_custom_call.1} parent=1 // pred_fallthru
      _
    // Predicated region
    $region6: #{tpu_custom_call.1} parent=1 // pred_check
      _
    $region7: #{tpu_custom_call.1} parent=1 // pred_check_branch
      %27 = sbr.rel (0) target = $region9
    $region8: #{tpu_custom_call.1} parent=1 // pred_region
      %s29 = ssub.s32 1024, 1024
      %30 = vsyncadd [#allocation6], %s29
      %s31 = sshll.u32 [#allocation5], 4
      %s32 = int_to_ptr.vmem [resolvable:$true] %s31
      %37 = dma.hbm_to_vmem [thread:$0]  %s1, 1024, %s32, [#allocation6], 64, 64, 4
    $region9: #{tpu_custom_call.1} parent=1 // pred_fallthru
      _
    // Predicated region
    $region10: #{tpu_custom_call.1} parent=1 // pred_check
      _
    $region11: #{tpu_custom_call.1} parent=1 // pred_check_branch
      %39 = sbr.rel (0) target = $region13
    $region12: #{tpu_custom_call.1} parent=1 // pred_region
      %s41 = ssub.s32 128, 128
      %42 = vsyncadd [#allocation6], %s41
      %s44 = sshll.u32 [#allocation7], 4
      %s45 = int_to_ptr.vmem [resolvable:$true] %s44
      %47 = dma.hbm_to_vmem [thread:$0]  %s2, 128, %s45, [#allocation6]
    $region13: #{tpu_custom_call.1} parent=1 // pred_fallthru
      _
    // Predicated region
    $region14: #{tpu_custom_call.1} parent=1 // pred_check
      _
    $region15: #{tpu_custom_call.1} parent=1 // pred_check_branch
      %49 = sbr.rel (0) target = $region17
    $region16: #{tpu_custom_call.1} parent=1 // pred_region
      %s51 = ssub.s32 7168, 7168
      %52 = vsyncadd [#allocation9], %s51
      %s53 = sshll.u32 [#allocation8], 4
      %s54 = int_to_ptr.vmem [resolvable:$true] %s53
      %59 = dma.hbm_to_vmem [thread:$0]  %s3, 7168, %s54, [#allocation9], 64, 64, 4
    $region17: #{tpu_custom_call.1} parent=1 // pred_fallthru
      _
    // Predicated region
    $region18: #{tpu_custom_call.1} parent=1 // pred_check
      _
    $region19: #{tpu_custom_call.1} parent=1 // pred_check_branch
      %61 = sbr.rel (0) target = $region21
    $region20: #{tpu_custom_call.1} parent=1 // pred_region
      %s63 = ssub.s32 256, 256
      %64 = vsyncadd [#allocation9], %s63
      %s65 = sshll.u32 [#allocation10], 4
      %s66 = int_to_ptr.vmem [resolvable:$true] %s65
      %71 = dma.hbm_to_vmem [thread:$0]  %s4, 256, %s66, [#allocation9], 128, 128, 8
    $region21: #{tpu_custom_call.1} parent=1 // pred_fallthru
      _
    // Predicated region
    $region22: #{tpu_custom_call.1} parent=1 // pred_check
      _
    $region23: #{tpu_custom_call.1} parent=1 // pred_check_branch
      %73 = sbr.rel (0) target = $region25
    $region24: #{tpu_custom_call.1} parent=1 // pred_region
      %74 = dma.done [#allocation3], 2048
    $region25: #{tpu_custom_call.1} parent=1 // pred_fallthru
      _
    // Predicated region
    $region26: #{tpu_custom_call.1} parent=1 // pred_check
      _
    $region27: #{tpu_custom_call.1} parent=1 // pred_check_branch
      %76 = sbr.rel (0) target = $region29
    $region28: #{tpu_custom_call.1} parent=1 // pred_region
      %77 = dma.done [#allocation6], 1024
    $region29: #{tpu_custom_call.1} parent=1 // pred_fallthru
      _
    // Predicated region
    $region30: #{tpu_custom_call.1} parent=1 // pred_check
      _
    $region31: #{tpu_custom_call.1} parent=1 // pred_check_branch
      %79 = sbr.rel (0) target = $region33
    $region32: #{tpu_custom_call.1} parent=1 // pred_region
      %80 = dma.done [#allocation6], 128
    $region33: #{tpu_custom_call.1} parent=1 // pred_fallthru
      _
    // Predicated region
    $region34: #{tpu_custom_call.1} parent=1 // pred_check
      _
    $region35: #{tpu_custom_call.1} parent=1 // pred_check_branch
      %82 = sbr.rel (0) target = $region37
    $region36: #{tpu_custom_call.1} parent=1 // pred_region
      %83 = dma.done [#allocation9], 7168
    $region37: #{tpu_custom_call.1} parent=1 // pred_fallthru
      _
    // Predicated region
    $region38: #{tpu_custom_call.1} parent=1 // pred_check
      _
    $region39: #{tpu_custom_call.1} parent=1 // pred_check_branch
      %85 = sbr.rel (0) target = $region41
    $region40: #{tpu_custom_call.1} parent=1 // pred_region
      %86 = dma.done [#allocation9], 256
    $region41: #{tpu_custom_call.1} parent=1 // pred_fallthru
      _
    %v88 = vld [vmem:[#allocation10] sm:$0x1]
    %v89 = vld [vmem:[#allocation10 + $0x1] sm:$0x1]
    %v90 = vld [vmem:[#allocation10 + $0x2] sm:$0x1]
    %v91 = vld [vmem:[#allocation10 + $0x3] sm:$0x1]
    %v92 = vld [vmem:[#allocation10 + $0x4] sm:$0x1]
    %v93 = vld [vmem:[#allocation10 + $0x5] sm:$0x1]
    %v94 = vld [vmem:[#allocation10 + $0x6] sm:$0x1]
    %v95 = vld [vmem:[#allocation10 + $0x7] sm:$0x1]
    %v96 = vld [vmem:[#allocation10 + $0x8] sm:$0x1]
    %v97 = vld [vmem:[#allocation2] sm:$0xff]
    %v98 = vld [vmem:[#allocation2 + $0x8] sm:$0xff]
    %v99 = vld [vmem:[#allocation2 + $0x10] sm:$0xff]
    %v100 = vld [vmem:[#allocation2 + $0x18] sm:$0xff]
    %v101 = vld [vmem:[#allocation2 + $0x20] sm:$0xff]
    %v102 = vld [vmem:[#allocation2 + $0x28] sm:$0xff]
    %v103 = vld [vmem:[#allocation2 + $0x30] sm:$0xff]
    %v104 = vld [vmem:[#allocation2 + $0x38] sm:$0xff]
    %v105 = vld [vmem:[#allocation2 + $0x40] sm:$0xff]
    %v106 = vld [vmem:[#allocation2 + $0x48] sm:$0xff]
    %v107 = vld [vmem:[#allocation2 + $0x50] sm:$0xff]
    %v108 = vld [vmem:[#allocation2 + $0x58] sm:$0xff]
    %v109 = vld [vmem:[#allocation2 + $0x60] sm:$0xff]
    %v110 = vld [vmem:[#allocation2 + $0x68] sm:$0xff]
    %v111 = vld [vmem:[#allocation2 + $0x70] sm:$0xff]
    %v112 = vld [vmem:[#allocation2 + $0x78] sm:$0xff]
    %v113 = vpack.c.bf16 %v98, %v97
    %v114 = vpack.c.bf16 %v100, %v99
    %v115 = vpack.c.bf16 %v102, %v101
    %v116 = vpack.c.bf16 %v104, %v103
    %v117 = vpack.c.bf16 %v106, %v105
    %v118 = vpack.c.bf16 %v108, %v107
    %v119 = vpack.c.bf16 %v110, %v109
    %v120 = vpack.c.bf16 %v112, %v111
    %v121 = vld [vmem:[#allocation5] sm:$0xf]
    %v122 = vld [vmem:[#allocation5 + $0x4] sm:$0xf]
    %v123 = vld [vmem:[#allocation5 + $0x8] sm:$0xf]
    %v124 = vld [vmem:[#allocation5 + $0xc] sm:$0xf]
    %v125 = vld [vmem:[#allocation5 + $0x10] sm:$0xf]
    %v126 = vld [vmem:[#allocation5 + $0x14] sm:$0xf]
    %v127 = vld [vmem:[#allocation5 + $0x18] sm:$0xf]
    %v128 = vld [vmem:[#allocation5 + $0x1c] sm:$0xf]
    %v129 = vld [vmem:[#allocation5 + $0x20] sm:$0xf]
    %v130 = vld [vmem:[#allocation5 + $0x24] sm:$0xf]
    %v131 = vld [vmem:[#allocation5 + $0x28] sm:$0xf]
    %v132 = vld [vmem:[#allocation5 + $0x2c] sm:$0xf]
    %v133 = vld [vmem:[#allocation5 + $0x30] sm:$0xf]
    %v134 = vld [vmem:[#allocation5 + $0x34] sm:$0xf]
    %v135 = vld [vmem:[#allocation5 + $0x38] sm:$0xf]
    %v136 = vld [vmem:[#allocation5 + $0x3c] sm:$0xf]
    %v137 = vld [vmem:[#allocation7] sm:$0xff]
    %v138 = vld [vmem:[#allocation8] sm:$0xf]
    %v139 = vld [vmem:[#allocation8 + $0x4] sm:$0xf]
    %v140 = vld [vmem:[#allocation8 + $0x8] sm:$0xf]
    %v141 = vld [vmem:[#allocation8 + $0xc] sm:$0xf]
    %v142 = vld [vmem:[#allocation8 + $0x10] sm:$0xf]
    %v143 = vld [vmem:[#allocation8 + $0x14] sm:$0xf]
    %v144 = vld [vmem:[#allocation8 + $0x18] sm:$0xf]
    %v145 = vld [vmem:[#allocation8 + $0x1c] sm:$0xf]
    %v146 = vld [vmem:[#allocation8 + $0x20] sm:$0xf]
    %v147 = vld [vmem:[#allocation8 + $0x24] sm:$0xf]
    %v148 = vld [vmem:[#allocation8 + $0x28] sm:$0xf]
    %v149 = vld [vmem:[#allocation8 + $0x2c] sm:$0xf]
    %v150 = vld [vmem:[#allocation8 + $0x30] sm:$0xf]
    %v151 = vld [vmem:[#allocation8 + $0x34] sm:$0xf]
    %v152 = vld [vmem:[#allocation8 + $0x38] sm:$0xf]
    %v153 = vld [vmem:[#allocation8 + $0x3c] sm:$0xf]
    %v154 = vlaneseq
    %v155 = vshrl.u32 %v154, 7
    %v156 = vsub.s32 0, %v155
    %v157 = vrot.slane %v88, %v156
    %v174 = vunpack.c.l.b16 %v138
    %v175 = vunpack.c.l.b16 %v139
    %v176 = vunpack.c.l.b16 %v140
    %v177 = vunpack.c.l.b16 %v141
    %v178 = vunpack.c.l.b16 %v142
    %v179 = vunpack.c.l.b16 %v143
    %v180 = vunpack.c.l.b16 %v144
    %v181 = vunpack.c.l.b16 %v145
    %v182 = vunpack.c.l.b16 %v146
    %v183 = vunpack.c.l.b16 %v147
    %v184 = vunpack.c.l.b16 %v148
    %v185 = vunpack.c.l.b16 %v149
    %v186 = vunpack.c.l.b16 %v150
    %v187 = vunpack.c.l.b16 %v151
    %v188 = vunpack.c.l.b16 %v152
    %v189 = vunpack.c.l.b16 %v153
    %v190 = vpack.c.b16 %v175, %v174
    %v191 = vpack.c.b16 %v177, %v176
    %v192 = vpack.c.b16 %v179, %v178
    %v193 = vpack.c.b16 %v181, %v180
    %v194 = vpack.c.b16 %v183, %v182
    %v195 = vpack.c.b16 %v185, %v184
    %v196 = vpack.c.b16 %v187, %v186
    %v197 = vpack.c.b16 %v189, %v188
    %206 = vmatprep.subr.bf16.mxu0 0
    %207 = vmatpush1.bf16.msra.mxu0 %v190
    %208 = vmatprep.subr.bf16.mxu0 0
    %209 = vmatpush1.bf16.msra.mxu0 %v191
    %210 = vmatprep.subr.bf16.mxu0 0
    %211 = vmatpush1.bf16.msra.mxu0 %v192
    %212 = vmatprep.subr.bf16.mxu0 0
    %213 = vmatpush1.bf16.msra.mxu0 %v193
    %214 = vmatprep.subr.bf16.mxu0 0
    %215 = vmatpush1.bf16.msra.mxu0 %v194
    %216 = vmatprep.subr.bf16.mxu0 0
    %217 = vmatpush1.bf16.msra.mxu0 %v195
    %218 = vmatprep.subr.bf16.mxu0 0
    %219 = vmatpush1.bf16.msra.mxu0 %v196
    %220 = vmatprep.subr.bf16.mxu0 0
    %221 = vmatpush1.bf16.msra.mxu0 %v197
    %222 = vmatprep.subr.bf16.mxu0 0
    %223 = vmatpush1.bf16.msra.mxu0 0
    %224 = vmatprep.subr.bf16.mxu0 0
    %225 = vmatpush1.bf16.msra.mxu0 0
    %226 = vmatprep.subr.bf16.mxu0 0
    %227 = vmatpush1.bf16.msra.mxu0 0
    %228 = vmatprep.subr.bf16.mxu0 0
    %229 = vmatpush1.bf16.msra.mxu0 0
    %230 = vmatprep.subr.bf16.mxu0 0
    %231 = vmatpush1.bf16.msra.mxu0 0
    %232 = vmatprep.subr.bf16.mxu0 0
    %233 = vmatpush1.bf16.msra.mxu0 0
    %234 = vmatprep.subr.bf16.mxu0 0
    %235 = vmatpush1.bf16.msra.mxu0 0
    %236 = vmatprep.subr.bf16.mxu0 0
    %237 = vmatpush1.bf16.msra.mxu0 0
    %238 = vmatprep.mubr.bf16.mxu0 0
    %239 = vmatmul.mubr.bf16.gmra.mrb[0].mxu0 %v113
    %v240 = vpop.f32.mrb[0].mxu0
    %v241 = vadd.f32 %v157, %v240
    %v242 = vpop.f32.mrb[0].mxu0
    %v243 = vpop.f32.mrb[0].mxu0
    %v244 = vadd.f32 %v157, %v243
    %v245 = vpop.f32.mrb[0].mxu0
    %246 = vmatprep.mubr.bf16.mxu0 0
    %247 = vmatmul.mubr.bf16.gmra.mrb[0].mxu0 %v114
    %v248 = vpop.f32.mrb[0].mxu0
    %v249 = vadd.f32 %v157, %v248
    %v250 = vpop.f32.mrb[0].mxu0
    %v251 = vpop.f32.mrb[0].mxu0
    %v252 = vadd.f32 %v157, %v251
    %v253 = vpop.f32.mrb[0].mxu0
    %254 = vmatprep.mubr.bf16.mxu0 0
    %255 = vmatmul.mubr.bf16.gmra.mrb[0].mxu0 %v115
    %v256 = vpop.f32.mrb[0].mxu0
    %v257 = vadd.f32 %v157, %v256
    %v258 = vpop.f32.mrb[0].mxu0
    %v259 = vpop.f32.mrb[0].mxu0
    %v260 = vadd.f32 %v157, %v259
    %v261 = vpop.f32.mrb[0].mxu0
    %262 = vmatprep.mubr.bf16.mxu0 0
    %263 = vmatmul.mubr.bf16.gmra.mrb[0].mxu0 %v116
    %v264 = vpop.f32.mrb[0].mxu0
    %v265 = vadd.f32 %v157, %v264
    %v266 = vpop.f32.mrb[0].mxu0
    %v267 = vpop.f32.mrb[0].mxu0
    %v268 = vadd.f32 %v157, %v267
    %v269 = vpop.f32.mrb[0].mxu0
    %270 = vmatprep.mubr.bf16.mxu0 0
    %271 = vmatmul.mubr.bf16.gmra.mrb[0].mxu0 %v117
    %v272 = vpop.f32.mrb[0].mxu0
    %v273 = vadd.f32 %v157, %v272
    %v274 = vpop.f32.mrb[0].mxu0
    %v275 = vpop.f32.mrb[0].mxu0
    %v276 = vadd.f32 %v157, %v275
    %v277 = vpop.f32.mrb[0].mxu0
    %278 = vmatprep.mubr.bf16.mxu0 0
    %279 = vmatmul.mubr.bf16.gmra.mrb[0].mxu0 %v118
    %v280 = vpop.f32.mrb[0].mxu0
    %v281 = vadd.f32 %v157, %v280
    %v282 = vpop.f32.mrb[0].mxu0
    %v283 = vpop.f32.mrb[0].mxu0
    %v284 = vadd.f32 %v157, %v283
    %v285 = vpop.f32.mrb[0].mxu0
    %286 = vmatprep.mubr.bf16.mxu0 0
    %287 = vmatmul.mubr.bf16.gmra.mrb[0].mxu0 %v119
    %v288 = vpop.f32.mrb[0].mxu0
    %v289 = vadd.f32 %v157, %v288
    %v290 = vpop.f32.mrb[0].mxu0
    %v291 = vpop.f32.mrb[0].mxu0
    %v292 = vadd.f32 %v157, %v291
    %v293 = vpop.f32.mrb[0].mxu0
    %294 = vmatprep.mubr.bf16.mxu0 0
    %295 = vmatmul.mubr.bf16.gmra.mrb[0].mxu0 %v120
    %v296 = vpop.f32.mrb[0].mxu0
    %v297 = vadd.f32 %v157, %v296
    %v298 = vpop.f32.mrb[0].mxu0
    %v299 = vpop.f32.mrb[0].mxu0
    %v300 = vadd.f32 %v157, %v299
    %v301 = vpop.f32.mrb[0].mxu0
    %302 = vdwg.mxu0
    %vm303 = vcmp.ge.f32.partialorder %v241, 0.0
    %vm304 = vcmp.ge.f32.partialorder %v244, 0.0
    %vm305 = vcmp.ge.f32.partialorder %v249, 0.0
    %vm306 = vcmp.ge.f32.partialorder %v252, 0.0
    %vm307 = vcmp.ge.f32.partialorder %v257, 0.0
    %vm308 = vcmp.ge.f32.partialorder %v260, 0.0
    %vm309 = vcmp.ge.f32.partialorder %v265, 0.0
    %vm310 = vcmp.ge.f32.partialorder %v268, 0.0
    %vm311 = vcmp.ge.f32.partialorder %v273, 0.0
    %vm312 = vcmp.ge.f32.partialorder %v276, 0.0
    %vm313 = vcmp.ge.f32.partialorder %v281, 0.0
    %vm314 = vcmp.ge.f32.partialorder %v284, 0.0
    %vm315 = vcmp.ge.f32.partialorder %v289, 0.0
    %vm316 = vcmp.ge.f32.partialorder %v292, 0.0
    %vm317 = vcmp.ge.f32.partialorder %v297, 0.0
    %vm318 = vcmp.ge.f32.partialorder %v300, 0.0
    %v319 = vlaneseq
    %v320 = vshrl.u32 %v319, 7
    %v321 = vsub.s32 0, %v320
    %v322 = vrot.slane %v95, %v321
    %v323 = vmul.f32 %v322, %v241
    %v324 = vmul.f32 %v322, %v244
    %v325 = vmul.f32 %v322, %v249
    %v326 = vmul.f32 %v322, %v252
    %v327 = vmul.f32 %v322, %v257
    %v328 = vmul.f32 %v322, %v260
    %v329 = vmul.f32 %v322, %v265
    %v330 = vmul.f32 %v322, %v268
    %v331 = vmul.f32 %v322, %v273
    %v332 = vmul.f32 %v322, %v276
    %v333 = vmul.f32 %v322, %v281
    %v334 = vmul.f32 %v322, %v284
    %v335 = vmul.f32 %v322, %v289
    %v336 = vmul.f32 %v322, %v292
    %v337 = vmul.f32 %v322, %v297
    %v338 = vmul.f32 %v322, %v300
    %v339 = vsel %vm303, %v241, %v323
    %v340 = vsel %vm304, %v244, %v324
    %v341 = vsel %vm305, %v249, %v325
    %v342 = vsel %vm306, %v252, %v326
    %v343 = vsel %vm307, %v257, %v327
    %v344 = vsel %vm308, %v260, %v328
    %v345 = vsel %vm309, %v265, %v329
    %v346 = vsel %vm310, %v268, %v330
    %v347 = vsel %vm311, %v273, %v331
    %v348 = vsel %vm312, %v276, %v332
    %v349 = vsel %vm313, %v281, %v333
    %v350 = vsel %vm314, %v284, %v334
    %v351 = vsel %vm315, %v289, %v335
    %v352 = vsel %vm316, %v292, %v336
    %v353 = vsel %vm317, %v297, %v337
    %v354 = vsel %vm318, %v300, %v338
    %v355 = vpack.c.bf16 %v340, %v339
    %v356 = vpack.c.bf16 %v342, %v341
    %v357 = vpack.c.bf16 %v344, %v343
    %v358 = vpack.c.bf16 %v346, %v345
    %v359 = vpack.c.bf16 %v348, %v347
    %v360 = vpack.c.bf16 %v350, %v349
    %v361 = vpack.c.bf16 %v352, %v351
    %v362 = vpack.c.bf16 %v354, %v353
    %v379 = vunpack.c.l.b16 %v121
    %v380 = vunpack.c.l.b16 %v122
    %v381 = vunpack.c.l.b16 %v123
    %v382 = vunpack.c.l.b16 %v124
    %v383 = vunpack.c.l.b16 %v125
    %v384 = vunpack.c.l.b16 %v126
    %v385 = vunpack.c.l.b16 %v127
    %v386 = vunpack.c.l.b16 %v128
    %v387 = vunpack.c.l.b16 %v129
    %v388 = vunpack.c.l.b16 %v130
    %v389 = vunpack.c.l.b16 %v131
    %v390 = vunpack.c.l.b16 %v132
    %v391 = vunpack.c.l.b16 %v133
    %v392 = vunpack.c.l.b16 %v134
    %v393 = vunpack.c.l.b16 %v135
    %v394 = vunpack.c.l.b16 %v136
    %v395 = vpack.c.b16 %v380, %v379
    %v396 = vpack.c.b16 %v382, %v381
    %v397 = vpack.c.b16 %v384, %v383
    %v398 = vpack.c.b16 %v386, %v385
    %v399 = vpack.c.b16 %v388, %v387
    %v400 = vpack.c.b16 %v390, %v389
    %v401 = vpack.c.b16 %v392, %v391
    %v402 = vpack.c.b16 %v394, %v393
    %411 = vmatprep.subr.bf16.mxu0 0
    %412 = vmatpush1.bf16.msra.mxu0 %v355
    %413 = vmatprep.subr.bf16.mxu0 0
    %414 = vmatpush1.bf16.msra.mxu0 %v356
    %415 = vmatprep.subr.bf16.mxu0 0
    %416 = vmatpush1.bf16.msra.mxu0 %v357
    %417 = vmatprep.subr.bf16.mxu0 0
    %418 = vmatpush1.bf16.msra.mxu0 %v358
    %419 = vmatprep.subr.bf16.mxu0 0
    %420 = vmatpush1.bf16.msra.mxu0 %v359
    %421 = vmatprep.subr.bf16.mxu0 0
    %422 = vmatpush1.bf16.msra.mxu0 %v360
    %423 = vmatprep.subr.bf16.mxu0 0
    %424 = vmatpush1.bf16.msra.mxu0 %v361
    %425 = vmatprep.subr.bf16.mxu0 0
    %426 = vmatpush1.bf16.msra.mxu0 %v362
    %427 = vmatprep.subr.bf16.mxu0 0
    %428 = vmatpush1.bf16.msra.mxu0 0
    %429 = vmatprep.subr.bf16.mxu0 0
    %430 = vmatpush1.bf16.msra.mxu0 0
    %431 = vmatprep.subr.bf16.mxu0 0
    %432 = vmatpush1.bf16.msra.mxu0 0
    %433 = vmatprep.subr.bf16.mxu0 0
    %434 = vmatpush1.bf16.msra.mxu0 0
    %435 = vmatprep.subr.bf16.mxu0 0
    %436 = vmatpush1.bf16.msra.mxu0 0
    %437 = vmatprep.subr.bf16.mxu0 0
    %438 = vmatpush1.bf16.msra.mxu0 0
    %439 = vmatprep.subr.bf16.mxu0 0
    %440 = vmatpush1.bf16.msra.mxu0 0
    %441 = vmatprep.subr.bf16.mxu0 0
    %442 = vmatpush1.bf16.msra.mxu0 0
    %443 = vmatprep.mubr.bf16.mxu0 0
    %444 = vmatmul.mubr.bf16.gmra.mrb[0].mxu0 %v395
    %v445 = vpop.f32.mrb[0].mxu0
    %v446 = vadd.f32 0.0, %v445
    %v447 = vpop.f32.mrb[0].mxu0
    %v448 = vpop.f32.mrb[0].mxu0
    %v449 = vadd.f32 0.0, %v448
    %v450 = vpop.f32.mrb[0].mxu0
    %451 = vmatprep.mubr.bf16.mxu0 0
    %452 = vmatmul.mubr.bf16.gmra.mrb[0].mxu0 %v396
    %v453 = vpop.f32.mrb[0].mxu0
    %v454 = vadd.f32 0.0, %v453
    %v455 = vpop.f32.mrb[0].mxu0
    %v456 = vpop.f32.mrb[0].mxu0
    %v457 = vadd.f32 0.0, %v456
    %v458 = vpop.f32.mrb[0].mxu0
    %459 = vmatprep.mubr.bf16.mxu0 0
    %460 = vmatmul.mubr.bf16.gmra.mrb[0].mxu0 %v397
    %v461 = vpop.f32.mrb[0].mxu0
    %v462 = vadd.f32 0.0, %v461
    %v463 = vpop.f32.mrb[0].mxu0
    %v464 = vpop.f32.mrb[0].mxu0
    %v465 = vadd.f32 0.0, %v464
    %v466 = vpop.f32.mrb[0].mxu0
    %467 = vmatprep.mubr.bf16.mxu0 0
    %468 = vmatmul.mubr.bf16.gmra.mrb[0].mxu0 %v398
    %v469 = vpop.f32.mrb[0].mxu0
    %v470 = vadd.f32 0.0, %v469
    %v471 = vpop.f32.mrb[0].mxu0
    %v472 = vpop.f32.mrb[0].mxu0
    %v473 = vadd.f32 0.0, %v472
    %v474 = vpop.f32.mrb[0].mxu0
    %475 = vmatprep.mubr.bf16.mxu0 0
    %476 = vmatmul.mubr.bf16.gmra.mrb[0].mxu0 %v399
    %v477 = vpop.f32.mrb[0].mxu0
    %v478 = vadd.f32 0.0, %v477
    %v479 = vpop.f32.mrb[0].mxu0
    %v480 = vpop.f32.mrb[0].mxu0
    %v481 = vadd.f32 0.0, %v480
    %v482 = vpop.f32.mrb[0].mxu0
    %483 = vmatprep.mubr.bf16.mxu0 0
    %484 = vmatmul.mubr.bf16.gmra.mrb[0].mxu0 %v400
    %v485 = vpop.f32.mrb[0].mxu0
    %v486 = vadd.f32 0.0, %v485
    %v487 = vpop.f32.mrb[0].mxu0
    %v488 = vpop.f32.mrb[0].mxu0
    %v489 = vadd.f32 0.0, %v488
    %v490 = vpop.f32.mrb[0].mxu0
    %491 = vmatprep.mubr.bf16.mxu0 0
    %492 = vmatmul.mubr.bf16.gmra.mrb[0].mxu0 %v401
    %v493 = vpop.f32.mrb[0].mxu0
    %v494 = vadd.f32 0.0, %v493
    %v495 = vpop.f32.mrb[0].mxu0
    %v496 = vpop.f32.mrb[0].mxu0
    %v497 = vadd.f32 0.0, %v496
    %v498 = vpop.f32.mrb[0].mxu0
    %499 = vmatprep.mubr.bf16.mxu0 0
    %500 = vmatmul.mubr.bf16.gmra.mrb[0].mxu0 %v402
    %v501 = vpop.f32.mrb[0].mxu0
    %v502 = vadd.f32 0.0, %v501
    %v503 = vpop.f32.mrb[0].mxu0
    %v504 = vpop.f32.mrb[0].mxu0
    %v505 = vadd.f32 0.0, %v504
    %v506 = vpop.f32.mrb[0].mxu0
    %507 = vdwg.mxu0
    %v508 = vpack.c.bf16 %v449, %v446
    %v509 = vpack.c.bf16 %v457, %v454
    %v510 = vpack.c.bf16 %v465, %v462
    %v511 = vpack.c.bf16 %v473, %v470
    %v512 = vpack.c.bf16 %v481, %v478
    %v513 = vpack.c.bf16 %v489, %v486
    %v514 = vpack.c.bf16 %v497, %v494
    %v515 = vpack.c.bf16 %v505, %v502
    %v516 = vld [vmem:[#allocation8 + $0x40] sm:$0xf]
    %v517 = vld [vmem:[#allocation8 + $0x44] sm:$0xf]
    %v518 = vld [vmem:[#allocation8 + $0x48] sm:$0xf]
    %v519 = vld [vmem:[#allocation8 + $0x4c] sm:$0xf]
    %v520 = vld [vmem:[#allocation8 + $0x50] sm:$0xf]
    %v521 = vld [vmem:[#allocation8 + $0x54] sm:$0xf]
    %v522 = vld [vmem:[#allocation8 + $0x58] sm:$0xf]
    %v523 = vld [vmem:[#allocation8 + $0x5c] sm:$0xf]
    %v524 = vld [vmem:[#allocation8 + $0x60] sm:$0xf]
    %v525 = vld [vmem:[#allocation8 + $0x64] sm:$0xf]
    %v526 = vld [vmem:[#allocation8 + $0x68] sm:$0xf]
    %v527 = vld [vmem:[#allocation8 + $0x6c] sm:$0xf]
    %v528 = vld [vmem:[#allocation8 + $0x70] sm:$0xf]
    %v529 = vld [vmem:[#allocation8 + $0x74] sm:$0xf]
    %v530 = vld [vmem:[#allocation8 + $0x78] sm:$0xf]
    %v531 = vld [vmem:[#allocation8 + $0x7c] sm:$0xf]
    %v532 = vlaneseq
    %v533 = vshrl.u32 %v532, 7
    %v534 = vsub.s32 0, %v533
    %v535 = vrot.slane %v89, %v534
    %v552 = vunpack.c.l.b16 %v516
    %v553 = vunpack.c.l.b16 %v517
    %v554 = vunpack.c.l.b16 %v518
    %v555 = vunpack.c.l.b16 %v519
    %v556 = vunpack.c.l.b16 %v520
    %v557 = vunpack.c.l.b16 %v521
    %v558 = vunpack.c.l.b16 %v522
    %v559 = vunpack.c.l.b16 %v523
    %v560 = vunpack.c.l.b16 %v524
    %v561 = vunpack.c.l.b16 %v525
    %v562 = vunpack.c.l.b16 %v526
    %v563 = vunpack.c.l.b16 %v527
    %v564 = vunpack.c.l.b16 %v528
    %v565 = vunpack.c.l.b16 %v529
    %v566 = vunpack.c.l.b16 %v530
    %v567 = vunpack.c.l.b16 %v531
    %v568 = vpack.c.b16 %v553, %v552
    %v569 = vpack.c.b16 %v555, %v554
    %v570 = vpack.c.b16 %v557, %v556
    %v571 = vpack.c.b16 %v559, %v558
    %v572 = vpack.c.b16 %v561, %v560
    %v573 = vpack.c.b16 %v563, %v562
    %v574 = vpack.c.b16 %v565, %v564
    %v575 = vpack.c.b16 %v567, %v566
    %584 = vmatprep.subr.bf16.mxu0 0
    %585 = vmatpush1.bf16.msra.mxu0 %v568
    %586 = vmatprep.subr.bf16.mxu0 0
    %587 = vmatpush1.bf16.msra.mxu0 %v569
    %588 = vmatprep.subr.bf16.mxu0 0
    %589 = vmatpush1.bf16.msra.mxu0 %v570
    %590 = vmatprep.subr.bf16.mxu0 0
    %591 = vmatpush1.bf16.msra.mxu0 %v571
    %592 = vmatprep.subr.bf16.mxu0 0
    %593 = vmatpush1.bf16.msra.mxu0 %v572
    %594 = vmatprep.subr.bf16.mxu0 0
    %595 = vmatpush1.bf16.msra.mxu0 %v573
    %596 = vmatprep.subr.bf16.mxu0 0
    %597 = vmatpush1.bf16.msra.mxu0 %v574
    %598 = vmatprep.subr.bf16.mxu0 0
    %599 = vmatpush1.bf16.msra.mxu0 %v575
    %600 = vmatprep.subr.bf16.mxu0 0
    %601 = vmatpush1.bf16.msra.mxu0 0
    %602 = vmatprep.subr.bf16.mxu0 0
    %603 = vmatpush1.bf16.msra.mxu0 0
    %604 = vmatprep.subr.bf16.mxu0 0
    %605 = vmatpush1.bf16.msra.mxu0 0
    %606 = vmatprep.subr.bf16.mxu0 0
    %607 = vmatpush1.bf16.msra.mxu0 0
    %608 = vmatprep.subr.bf16.mxu0 0
    %609 = vmatpush1.bf16.msra.mxu0 0
    %610 = vmatprep.subr.bf16.mxu0 0
    %611 = vmatpush1.bf16.msra.mxu0 0
    %612 = vmatprep.subr.bf16.mxu0 0
    %613 = vmatpush1.bf16.msra.mxu0 0
    %614 = vmatprep.subr.bf16.mxu0 0
    %615 = vmatpush1.bf16.msra.mxu0 0
    %616 = vmatprep.mubr.bf16.mxu0 0
    %617 = vmatmul.mubr.bf16.gmra.mrb[0].mxu0 %v508
    %v618 = vpop.f32.mrb[0].mxu0
    %v619 = vadd.f32 %v535, %v618
    %v620 = vpop.f32.mrb[0].mxu0
    %v621 = vpop.f32.mrb[0].mxu0
    %v622 = vadd.f32 %v535, %v621
    %v623 = vpop.f32.mrb[0].mxu0
    %624 = vmatprep.mubr.bf16.mxu0 0
    %625 = vmatmul.mubr.bf16.gmra.mrb[0].mxu0 %v509
    %v626 = vpop.f32.mrb[0].mxu0
    %v627 = vadd.f32 %v535, %v626
    %v628 = vpop.f32.mrb[0].mxu0
    %v629 = vpop.f32.mrb[0].mxu0
    %v630 = vadd.f32 %v535, %v629
    %v631 = vpop.f32.mrb[0].mxu0
    %632 = vmatprep.mubr.bf16.mxu0 0
    %633 = vmatmul.mubr.bf16.gmra.mrb[0].mxu0 %v510
    %v634 = vpop.f32.mrb[0].mxu0
    %v635 = vadd.f32 %v535, %v634
    %v636 = vpop.f32.mrb[0].mxu0
    %v637 = vpop.f32.mrb[0].mxu0
    %v638 = vadd.f32 %v535, %v637
    %v639 = vpop.f32.mrb[0].mxu0
    %640 = vmatprep.mubr.bf16.mxu0 0
    %641 = vmatmul.mubr.bf16.gmra.mrb[0].mxu0 %v511
    %v642 = vpop.f32.mrb[0].mxu0
    %v643 = vadd.f32 %v535, %v642
    %v644 = vpop.f32.mrb[0].mxu0
    %v645 = vpop.f32.mrb[0].mxu0
    %v646 = vadd.f32 %v535, %v645
    %v647 = vpop.f32.mrb[0].mxu0
    %648 = vmatprep.mubr.bf16.mxu0 0
    %649 = vmatmul.mubr.bf16.gmra.mrb[0].mxu0 %v512
    %v650 = vpop.f32.mrb[0].mxu0
    %v651 = vadd.f32 %v535, %v650
    %v652 = vpop.f32.mrb[0].mxu0
    %v653 = vpop.f32.mrb[0].mxu0
    %v654 = vadd.f32 %v535, %v653
    %v655 = vpop.f32.mrb[0].mxu0
    %656 = vmatprep.mubr.bf16.mxu0 0
    %657 = vmatmul.mubr.bf16.gmra.mrb[0].mxu0 %v513
    %v658 = vpop.f32.mrb[0].mxu0
    %v659 = vadd.f32 %v535, %v658
    %v660 = vpop.f32.mrb[0].mxu0
    %v661 = vpop.f32.mrb[0].mxu0
    %v662 = vadd.f32 %v535, %v661
    %v663 = vpop.f32.mrb[0].mxu0
    %664 = vmatprep.mubr.bf16.mxu0 0
    %665 = vmatmul.mubr.bf16.gmra.mrb[0].mxu0 %v514
    %v666 = vpop.f32.mrb[0].mxu0
    %v667 = vadd.f32 %v535, %v666
    %v668 = vpop.f32.mrb[0].mxu0
    %v669 = vpop.f32.mrb[0].mxu0
    %v670 = vadd.f32 %v535, %v669
    %v671 = vpop.f32.mrb[0].mxu0
    %672 = vmatprep.mubr.bf16.mxu0 0
    %673 = vmatmul.mubr.bf16.gmra.mrb[0].mxu0 %v515
    %v674 = vpop.f32.mrb[0].mxu0
    %v675 = vadd.f32 %v535, %v674
    %v676 = vpop.f32.mrb[0].mxu0
    %v677 = vpop.f32.mrb[0].mxu0
    %v678 = vadd.f32 %v535, %v677
    %v679 = vpop.f32.mrb[0].mxu0
    %680 = vdwg.mxu0
    %v681 = vpack.c.bf16 %v622, %v619
    %v682 = vpack.c.bf16 %v630, %v627
    %v683 = vpack.c.bf16 %v638, %v635
    %v684 = vpack.c.bf16 %v646, %v643
    %v685 = vpack.c.bf16 %v654, %v651
    %v686 = vpack.c.bf16 %v662, %v659
    %v687 = vpack.c.bf16 %v670, %v667
    %v688 = vpack.c.bf16 %v678, %v675
    %v689 = vld [vmem:[#allocation8 + $0x80] sm:$0xf]
    %v690 = vld [vmem:[#allocation8 + $0x84] sm:$0xf]
    %v691 = vld [vmem:[#allocation8 + $0x88] sm:$0xf]
    %v692 = vld [vmem:[#allocation8 + $0x8c] sm:$0xf]
    %v693 = vld [vmem:[#allocation8 + $0x90] sm:$0xf]
    %v694 = vld [vmem:[#allocation8 + $0x94] sm:$0xf]
    %v695 = vld [vmem:[#allocation8 + $0x98] sm:$0xf]
    %v696 = vld [vmem:[#allocation8 + $0x9c] sm:$0xf]
    %v697 = vld [vmem:[#allocation8 + $0xa0] sm:$0xf]
    %v698 = vld [vmem:[#allocation8 + $0xa4] sm:$0xf]
    %v699 = vld [vmem:[#allocation8 + $0xa8] sm:$0xf]
    %v700 = vld [vmem:[#allocation8 + $0xac] sm:$0xf]
    %v701 = vld [vmem:[#allocation8 + $0xb0] sm:$0xf]
    %v702 = vld [vmem:[#allocation8 + $0xb4] sm:$0xf]
    %v703 = vld [vmem:[#allocation8 + $0xb8] sm:$0xf]
    %v704 = vld [vmem:[#allocation8 + $0xbc] sm:$0xf]
    %v705 = vlaneseq
    %v706 = vshrl.u32 %v705, 7
    %v707 = vsub.s32 0, %v706
    %v708 = vrot.slane %v90, %v707
    %v725 = vunpack.c.l.b16 %v689
    %v726 = vunpack.c.l.b16 %v690
    %v727 = vunpack.c.l.b16 %v691
    %v728 = vunpack.c.l.b16 %v692
    %v729 = vunpack.c.l.b16 %v693
    %v730 = vunpack.c.l.b16 %v694
    %v731 = vunpack.c.l.b16 %v695
    %v732 = vunpack.c.l.b16 %v696
    %v733 = vunpack.c.l.b16 %v697
    %v734 = vunpack.c.l.b16 %v698
    %v735 = vunpack.c.l.b16 %v699
    %v736 = vunpack.c.l.b16 %v700
    %v737 = vunpack.c.l.b16 %v701
    %v738 = vunpack.c.l.b16 %v702
    %v739 = vunpack.c.l.b16 %v703
    %v740 = vunpack.c.l.b16 %v704
    %v741 = vpack.c.b16 %v726, %v725
    %v742 = vpack.c.b16 %v728, %v727
    %v743 = vpack.c.b16 %v730, %v729
    %v744 = vpack.c.b16 %v732, %v731
    %v745 = vpack.c.b16 %v734, %v733
    %v746 = vpack.c.b16 %v736, %v735
    %v747 = vpack.c.b16 %v738, %v737
    %v748 = vpack.c.b16 %v740, %v739
    %757 = vmatprep.subr.bf16.mxu0 0
    %758 = vmatpush1.bf16.msra.mxu0 %v741
    %759 = vmatprep.subr.bf16.mxu0 0
    %760 = vmatpush1.bf16.msra.mxu0 %v742
    %761 = vmatprep.subr.bf16.mxu0 0
    %762 = vmatpush1.bf16.msra.mxu0 %v743
    %763 = vmatprep.subr.bf16.mxu0 0
    %764 = vmatpush1.bf16.msra.mxu0 %v744
    %765 = vmatprep.subr.bf16.mxu0 0
    %766 = vmatpush1.bf16.msra.mxu0 %v745
    %767 = vmatprep.subr.bf16.mxu0 0
    %768 = vmatpush1.bf16.msra.mxu0 %v746
    %769 = vmatprep.subr.bf16.mxu0 0
    %770 = vmatpush1.bf16.msra.mxu0 %v747
    %771 = vmatprep.subr.bf16.mxu0 0
    %772 = vmatpush1.bf16.msra.mxu0 %v748
    %773 = vmatprep.subr.bf16.mxu0 0
    %774 = vmatpush1.bf16.msra.mxu0 0
    %775 = vmatprep.subr.bf16.mxu0 0
    %776 = vmatpush1.bf16.msra.mxu0 0
    %777 = vmatprep.subr.bf16.mxu0 0
    %778 = vmatpush1.bf16.msra.mxu0 0
    %779 = vmatprep.subr.bf16.mxu0 0
    %780 = vmatpush1.bf16.msra.mxu0 0
    %781 = vmatprep.subr.bf16.mxu0 0
    %782 = vmatpush1.bf16.msra.mxu0 0
    %783 = vmatprep.subr.bf16.mxu0 0
    %784 = vmatpush1.bf16.msra.mxu0 0
    %785 = vmatprep.subr.bf16.mxu0 0
    %786 = vmatpush1.bf16.msra.mxu0 0
    %787 = vmatprep.subr.bf16.mxu0 0
    %788 = vmatpush1.bf16.msra.mxu0 0
    %789 = vmatprep.mubr.bf16.mxu0 0
    %790 = vmatmul.mubr.bf16.gmra.mrb[0].mxu0 %v681
    %v791 = vpop.f32.mrb[0].mxu0
    %v792 = vadd.f32 %v708, %v791
    %v793 = vpop.f32.mrb[0].mxu0
    %v794 = vpop.f32.mrb[0].mxu0
    %v795 = vadd.f32 %v708, %v794
    %v796 = vpop.f32.mrb[0].mxu0
    %797 = vmatprep.mubr.bf16.mxu0 0
    %798 = vmatmul.mubr.bf16.gmra.mrb[0].mxu0 %v682
    %v799 = vpop.f32.mrb[0].mxu0
    %v800 = vadd.f32 %v708, %v799
    %v801 = vpop.f32.mrb[0].mxu0
    %v802 = vpop.f32.mrb[0].mxu0
    %v803 = vadd.f32 %v708, %v802
    %v804 = vpop.f32.mrb[0].mxu0
    %805 = vmatprep.mubr.bf16.mxu0 0
    %806 = vmatmul.mubr.bf16.gmra.mrb[0].mxu0 %v683
    %v807 = vpop.f32.mrb[0].mxu0
    %v808 = vadd.f32 %v708, %v807
    %v809 = vpop.f32.mrb[0].mxu0
    %v810 = vpop.f32.mrb[0].mxu0
    %v811 = vadd.f32 %v708, %v810
    %v812 = vpop.f32.mrb[0].mxu0
    %813 = vmatprep.mubr.bf16.mxu0 0
    %814 = vmatmul.mubr.bf16.gmra.mrb[0].mxu0 %v684
    %v815 = vpop.f32.mrb[0].mxu0
    %v816 = vadd.f32 %v708, %v815
    %v817 = vpop.f32.mrb[0].mxu0
    %v818 = vpop.f32.mrb[0].mxu0
    %v819 = vadd.f32 %v708, %v818
    %v820 = vpop.f32.mrb[0].mxu0
    %821 = vmatprep.mubr.bf16.mxu0 0
    %822 = vmatmul.mubr.bf16.gmra.mrb[0].mxu0 %v685
    %v823 = vpop.f32.mrb[0].mxu0
    %v824 = vadd.f32 %v708, %v823
    %v825 = vpop.f32.mrb[0].mxu0
    %v826 = vpop.f32.mrb[0].mxu0
    %v827 = vadd.f32 %v708, %v826
    %v828 = vpop.f32.mrb[0].mxu0
    %829 = vmatprep.mubr.bf16.mxu0 0
    %830 = vmatmul.mubr.bf16.gmra.mrb[0].mxu0 %v686
    %v831 = vpop.f32.mrb[0].mxu0
    %v832 = vadd.f32 %v708, %v831
    %v833 = vpop.f32.mrb[0].mxu0
    %v834 = vpop.f32.mrb[0].mxu0
    %v835 = vadd.f32 %v708, %v834
    %v836 = vpop.f32.mrb[0].mxu0
    %837 = vmatprep.mubr.bf16.mxu0 0
    %838 = vmatmul.mubr.bf16.gmra.mrb[0].mxu0 %v687
    %v839 = vpop.f32.mrb[0].mxu0
    %v840 = vadd.f32 %v708, %v839
    %v841 = vpop.f32.mrb[0].mxu0
    %v842 = vpop.f32.mrb[0].mxu0
    %v843 = vadd.f32 %v708, %v842
    %v844 = vpop.f32.mrb[0].mxu0
    %845 = vmatprep.mubr.bf16.mxu0 0
    %846 = vmatmul.mubr.bf16.gmra.mrb[0].mxu0 %v688
    %v847 = vpop.f32.mrb[0].mxu0
    %v848 = vadd.f32 %v708, %v847
    %v849 = vpop.f32.mrb[0].mxu0
    %v850 = vpop.f32.mrb[0].mxu0
    %v851 = vadd.f32 %v708, %v850
    %v852 = vpop.f32.mrb[0].mxu0
    %853 = vdwg.mxu0
    %vm854 = vcmp.ge.f32.partialorder %v792, 0.0
    %vm855 = vcmp.ge.f32.partialorder %v795, 0.0
    %vm856 = vcmp.ge.f32.partialorder %v800, 0.0
    %vm857 = vcmp.ge.f32.partialorder %v803, 0.0
    %vm858 = vcmp.ge.f32.partialorder %v808, 0.0
    %vm859 = vcmp.ge.f32.partialorder %v811, 0.0
    %vm860 = vcmp.ge.f32.partialorder %v816, 0.0
    %vm861 = vcmp.ge.f32.partialorder %v819, 0.0
    %vm862 = vcmp.ge.f32.partialorder %v824, 0.0
    %vm863 = vcmp.ge.f32.partialorder %v827, 0.0
    %vm864 = vcmp.ge.f32.partialorder %v832, 0.0
    %vm865 = vcmp.ge.f32.partialorder %v835, 0.0
    %vm866 = vcmp.ge.f32.partialorder %v840, 0.0
    %vm867 = vcmp.ge.f32.partialorder %v843, 0.0
    %vm868 = vcmp.ge.f32.partialorder %v848, 0.0
    %vm869 = vcmp.ge.f32.partialorder %v851, 0.0
    %v870 = vlaneseq
    %v871 = vshrl.u32 %v870, 7
    %v872 = vsub.s32 0, %v871
    %v873 = vrot.slane %v96, %v872
    %v874 = vmul.f32 %v873, %v792
    %v875 = vmul.f32 %v873, %v795
    %v876 = vmul.f32 %v873, %v800
    %v877 = vmul.f32 %v873, %v803
    %v878 = vmul.f32 %v873, %v808
    %v879 = vmul.f32 %v873, %v811
    %v880 = vmul.f32 %v873, %v816
    %v881 = vmul.f32 %v873, %v819
    %v882 = vmul.f32 %v873, %v824
    %v883 = vmul.f32 %v873, %v827
    %v884 = vmul.f32 %v873, %v832
    %v885 = vmul.f32 %v873, %v835
    %v886 = vmul.f32 %v873, %v840
    %v887 = vmul.f32 %v873, %v843
    %v888 = vmul.f32 %v873, %v848
    %v889 = vmul.f32 %v873, %v851
    %v890 = vsel %vm854, %v792, %v874
    %v891 = vsel %vm855, %v795, %v875
    %v892 = vsel %vm856, %v800, %v876
    %v893 = vsel %vm857, %v803, %v877
    %v894 = vsel %vm858, %v808, %v878
    %v895 = vsel %vm859, %v811, %v879
    %v896 = vsel %vm860, %v816, %v880
    %v897 = vsel %vm861, %v819, %v881
    %v898 = vsel %vm862, %v824, %v882
    %v899 = vsel %vm863, %v827, %v883
    %v900 = vsel %vm864, %v832, %v884
    %v901 = vsel %vm865, %v835, %v885
    %v902 = vsel %vm866, %v840, %v886
    %v903 = vsel %vm867, %v843, %v887
    %v904 = vsel %vm868, %v848, %v888
    %v905 = vsel %vm869, %v851, %v889
    %v906 = vpack.c.bf16 %v891, %v890
    %v907 = vpack.c.bf16 %v893, %v892
    %v908 = vpack.c.bf16 %v895, %v894
    %v909 = vpack.c.bf16 %v897, %v896
    %v910 = vpack.c.bf16 %v899, %v898
    %v911 = vpack.c.bf16 %v901, %v900
    %v912 = vpack.c.bf16 %v903, %v902
    %v913 = vpack.c.bf16 %v905, %v904
    %v914 = vld [vmem:[#allocation8 + $0xc0] sm:$0xf]
    %v915 = vld [vmem:[#allocation8 + $0xc4] sm:$0xf]
    %v916 = vld [vmem:[#allocation8 + $0xc8] sm:$0xf]
    %v917 = vld [vmem:[#allocation8 + $0xcc] sm:$0xf]
    %v918 = vld [vmem:[#allocation8 + $0xd0] sm:$0xf]
    %v919 = vld [vmem:[#allocation8 + $0xd4] sm:$0xf]
    %v920 = vld [vmem:[#allocation8 + $0xd8] sm:$0xf]
    %v921 = vld [vmem:[#allocation8 + $0xdc] sm:$0xf]
    %v922 = vld [vmem:[#allocation8 + $0xe0] sm:$0xf]
    %v923 = vld [vmem:[#allocation8 + $0xe4] sm:$0xf]
    %v924 = vld [vmem:[#allocation8 + $0xe8] sm:$0xf]
    %v925 = vld [vmem:[#allocation8 + $0xec] sm:$0xf]
    %v926 = vld [vmem:[#allocation8 + $0xf0] sm:$0xf]
    %v927 = vld [vmem:[#allocation8 + $0xf4] sm:$0xf]
    %v928 = vld [vmem:[#allocation8 + $0xf8] sm:$0xf]
    %v929 = vld [vmem:[#allocation8 + $0xfc] sm:$0xf]
    %v930 = vld [vmem:[#allocation8 + $0x100] sm:$0xf]
    %v931 = vld [vmem:[#allocation8 + $0x104] sm:$0xf]
    %v932 = vld [vmem:[#allocation8 + $0x108] sm:$0xf]
    %v933 = vld [vmem:[#allocation8 + $0x10c] sm:$0xf]
    %v934 = vld [vmem:[#allocation8 + $0x110] sm:$0xf]
    %v935 = vld [vmem:[#allocation8 + $0x114] sm:$0xf]
    %v936 = vld [vmem:[#allocation8 + $0x118] sm:$0xf]
    %v937 = vld [vmem:[#allocation8 + $0x11c] sm:$0xf]
    %v938 = vld [vmem:[#allocation8 + $0x120] sm:$0xf]
    %v939 = vld [vmem:[#allocation8 + $0x124] sm:$0xf]
    %v940 = vld [vmem:[#allocation8 + $0x128] sm:$0xf]
    %v941 = vld [vmem:[#allocation8 + $0x12c] sm:$0xf]
    %v942 = vld [vmem:[#allocation8 + $0x130] sm:$0xf]
    %v943 = vld [vmem:[#allocation8 + $0x134] sm:$0xf]
    %v944 = vld [vmem:[#allocation8 + $0x138] sm:$0xf]
    %v945 = vld [vmem:[#allocation8 + $0x13c] sm:$0xf]
    %v962 = vunpack.c.l.b16 %v930
    %v963 = vunpack.c.l.b16 %v931
    %v964 = vunpack.c.l.b16 %v932
    %v965 = vunpack.c.l.b16 %v933
    %v966 = vunpack.c.l.b16 %v934
    %v967 = vunpack.c.l.b16 %v935
    %v968 = vunpack.c.l.b16 %v936
    %v969 = vunpack.c.l.b16 %v937
    %v970 = vunpack.c.l.b16 %v938
    %v971 = vunpack.c.l.b16 %v939
    %v972 = vunpack.c.l.b16 %v940
    %v973 = vunpack.c.l.b16 %v941
    %v974 = vunpack.c.l.b16 %v942
    %v975 = vunpack.c.l.b16 %v943
    %v976 = vunpack.c.l.b16 %v944
    %v977 = vunpack.c.l.b16 %v945
    %v978 = vpack.c.b16 %v963, %v962
    %v979 = vpack.c.b16 %v965, %v964
    %v980 = vpack.c.b16 %v967, %v966
    %v981 = vpack.c.b16 %v969, %v968
    %v982 = vpack.c.b16 %v971, %v970
    %v983 = vpack.c.b16 %v973, %v972
    %v984 = vpack.c.b16 %v975, %v974
    %v985 = vpack.c.b16 %v977, %v976
    %994 = vmatprep.subr.bf16.mxu0 0
    %995 = vmatpush1.bf16.msra.mxu0 %v978
    %996 = vmatprep.subr.bf16.mxu0 0
    %997 = vmatpush1.bf16.msra.mxu0 %v979
    %998 = vmatprep.subr.bf16.mxu0 0
    %999 = vmatpush1.bf16.msra.mxu0 %v980
    %1000 = vmatprep.subr.bf16.mxu0 0
    %1001 = vmatpush1.bf16.msra.mxu0 %v981
    %1002 = vmatprep.subr.bf16.mxu0 0
    %1003 = vmatpush1.bf16.msra.mxu0 %v982
    %1004 = vmatprep.subr.bf16.mxu0 0
    %1005 = vmatpush1.bf16.msra.mxu0 %v983
    %1006 = vmatprep.subr.bf16.mxu0 0
    %1007 = vmatpush1.bf16.msra.mxu0 %v984
    %1008 = vmatprep.subr.bf16.mxu0 0
    %1009 = vmatpush1.bf16.msra.mxu0 %v985
    %1010 = vmatprep.subr.bf16.mxu0 0
    %1011 = vmatpush1.bf16.msra.mxu0 0
    %1012 = vmatprep.subr.bf16.mxu0 0
    %1013 = vmatpush1.bf16.msra.mxu0 0
    %1014 = vmatprep.subr.bf16.mxu0 0
    %1015 = vmatpush1.bf16.msra.mxu0 0
    %1016 = vmatprep.subr.bf16.mxu0 0
    %1017 = vmatpush1.bf16.msra.mxu0 0
    %1018 = vmatprep.subr.bf16.mxu0 0
    %1019 = vmatpush1.bf16.msra.mxu0 0
    %1020 = vmatprep.subr.bf16.mxu0 0
    %1021 = vmatpush1.bf16.msra.mxu0 0
    %1022 = vmatprep.subr.bf16.mxu0 0
    %1023 = vmatpush1.bf16.msra.mxu0 0
    %1024 = vmatprep.subr.bf16.mxu0 0
    %1025 = vmatpush1.bf16.msra.mxu0 0
    %1026 = vmatprep.mubr.bf16.mxu0 0
    %1027 = vmatmul.mubr.bf16.gmra.mrb[0].mxu0 %v906
    %v1028 = vpop.f32.mrb[0].mxu0
    %v1029 = vadd.f32 0.0, %v1028
    %v1030 = vpop.f32.mrb[0].mxu0
    %v1031 = vpop.f32.mrb[0].mxu0
    %v1032 = vadd.f32 0.0, %v1031
    %v1033 = vpop.f32.mrb[0].mxu0
    %1034 = vmatprep.mubr.bf16.mxu0 0
    %1035 = vmatmul.mubr.bf16.gmra.mrb[0].mxu0 %v907
    %v1036 = vpop.f32.mrb[0].mxu0
    %v1037 = vadd.f32 0.0, %v1036
    %v1038 = vpop.f32.mrb[0].mxu0
    %v1039 = vpop.f32.mrb[0].mxu0
    %v1040 = vadd.f32 0.0, %v1039
    %v1041 = vpop.f32.mrb[0].mxu0
    %1042 = vmatprep.mubr.bf16.mxu0 0
    %1043 = vmatmul.mubr.bf16.gmra.mrb[0].mxu0 %v908
    %v1044 = vpop.f32.mrb[0].mxu0
    %v1045 = vadd.f32 0.0, %v1044
    %v1046 = vpop.f32.mrb[0].mxu0
    %v1047 = vpop.f32.mrb[0].mxu0
    %v1048 = vadd.f32 0.0, %v1047
    %v1049 = vpop.f32.mrb[0].mxu0
    %1050 = vmatprep.mubr.bf16.mxu0 0
    %1051 = vmatmul.mubr.bf16.gmra.mrb[0].mxu0 %v909
    %v1052 = vpop.f32.mrb[0].mxu0
    %v1053 = vadd.f32 0.0, %v1052
    %v1054 = vpop.f32.mrb[0].mxu0
    %v1055 = vpop.f32.mrb[0].mxu0
    %v1056 = vadd.f32 0.0, %v1055
    %v1057 = vpop.f32.mrb[0].mxu0
    %1058 = vmatprep.mubr.bf16.mxu0 0
    %1059 = vmatmul.mubr.bf16.gmra.mrb[0].mxu0 %v910
    %v1060 = vpop.f32.mrb[0].mxu0
    %v1061 = vadd.f32 0.0, %v1060
    %v1062 = vpop.f32.mrb[0].mxu0
    %v1063 = vpop.f32.mrb[0].mxu0
    %v1064 = vadd.f32 0.0, %v1063
    %v1065 = vpop.f32.mrb[0].mxu0
    %1066 = vmatprep.mubr.bf16.mxu0 0
    %1067 = vmatmul.mubr.bf16.gmra.mrb[0].mxu0 %v911
    %v1068 = vpop.f32.mrb[0].mxu0
    %v1069 = vadd.f32 0.0, %v1068
    %v1070 = vpop.f32.mrb[0].mxu0
    %v1071 = vpop.f32.mrb[0].mxu0
    %v1072 = vadd.f32 0.0, %v1071
    %v1073 = vpop.f32.mrb[0].mxu0
    %1074 = vmatprep.mubr.bf16.mxu0 0
    %1075 = vmatmul.mubr.bf16.gmra.mrb[0].mxu0 %v912
    %v1076 = vpop.f32.mrb[0].mxu0
    %v1077 = vadd.f32 0.0, %v1076
    %v1078 = vpop.f32.mrb[0].mxu0
    %v1079 = vpop.f32.mrb[0].mxu0
    %v1080 = vadd.f32 0.0, %v1079
    %v1081 = vpop.f32.mrb[0].mxu0
    %1082 = vmatprep.mubr.bf16.mxu0 0
    %1083 = vmatmul.mubr.bf16.gmra.mrb[0].mxu0 %v913
    %v1084 = vpop.f32.mrb[0].mxu0
    %v1085 = vadd.f32 0.0, %v1084
    %v1086 = vpop.f32.mrb[0].mxu0
    %v1087 = vpop.f32.mrb[0].mxu0
    %v1088 = vadd.f32 0.0, %v1087
    %v1089 = vpop.f32.mrb[0].mxu0
    %1090 = vdwg.mxu0
    %v1107 = vunpack.c.l.b16 %v914
    %v1108 = vunpack.c.l.b16 %v915
    %v1109 = vunpack.c.l.b16 %v916
    %v1110 = vunpack.c.l.b16 %v917
    %v1111 = vunpack.c.l.b16 %v918
    %v1112 = vunpack.c.l.b16 %v919
    %v1113 = vunpack.c.l.b16 %v920
    %v1114 = vunpack.c.l.b16 %v921
    %v1115 = vunpack.c.l.b16 %v922
    %v1116 = vunpack.c.l.b16 %v923
    %v1117 = vunpack.c.l.b16 %v924
    %v1118 = vunpack.c.l.b16 %v925
    %v1119 = vunpack.c.l.b16 %v926
    %v1120 = vunpack.c.l.b16 %v927
    %v1121 = vunpack.c.l.b16 %v928
    %v1122 = vunpack.c.l.b16 %v929
    %v1123 = vpack.c.b16 %v1108, %v1107
    %v1124 = vpack.c.b16 %v1110, %v1109
    %v1125 = vpack.c.b16 %v1112, %v1111
    %v1126 = vpack.c.b16 %v1114, %v1113
    %v1127 = vpack.c.b16 %v1116, %v1115
    %v1128 = vpack.c.b16 %v1118, %v1117
    %v1129 = vpack.c.b16 %v1120, %v1119
    %v1130 = vpack.c.b16 %v1122, %v1121
    %1139 = vmatprep.subr.bf16.mxu0 0
    %1140 = vmatpush1.bf16.msra.mxu0 %v1123
    %1141 = vmatprep.subr.bf16.mxu0 0
    %1142 = vmatpush1.bf16.msra.mxu0 %v1124
    %1143 = vmatprep.subr.bf16.mxu0 0
    %1144 = vmatpush1.bf16.msra.mxu0 %v1125
    %1145 = vmatprep.subr.bf16.mxu0 0
    %1146 = vmatpush1.bf16.msra.mxu0 %v1126
    %1147 = vmatprep.subr.bf16.mxu0 0
    %1148 = vmatpush1.bf16.msra.mxu0 %v1127
    %1149 = vmatprep.subr.bf16.mxu0 0
    %1150 = vmatpush1.bf16.msra.mxu0 %v1128
    %1151 = vmatprep.subr.bf16.mxu0 0
    %1152 = vmatpush1.bf16.msra.mxu0 %v1129
    %1153 = vmatprep.subr.bf16.mxu0 0
    %1154 = vmatpush1.bf16.msra.mxu0 %v1130
    %1155 = vmatprep.subr.bf16.mxu0 0
    %1156 = vmatpush1.bf16.msra.mxu0 0
    %1157 = vmatprep.subr.bf16.mxu0 0
    %1158 = vmatpush1.bf16.msra.mxu0 0
    %1159 = vmatprep.subr.bf16.mxu0 0
    %1160 = vmatpush1.bf16.msra.mxu0 0
    %1161 = vmatprep.subr.bf16.mxu0 0
    %1162 = vmatpush1.bf16.msra.mxu0 0
    %1163 = vmatprep.subr.bf16.mxu0 0
    %1164 = vmatpush1.bf16.msra.mxu0 0
    %1165 = vmatprep.subr.bf16.mxu0 0
    %1166 = vmatpush1.bf16.msra.mxu0 0
    %1167 = vmatprep.subr.bf16.mxu0 0
    %1168 = vmatpush1.bf16.msra.mxu0 0
    %1169 = vmatprep.subr.bf16.mxu0 0
    %1170 = vmatpush1.bf16.msra.mxu0 0
    %1171 = vmatprep.mubr.bf16.mxu0 0
    %1172 = vmatmul.mubr.bf16.gmra.mrb[0].mxu0 %v113
    %v1173 = vpop.f32.mrb[0].mxu0
    %v1174 = vadd.f32 %v1029, %v1173
    %v1175 = vpop.f32.mrb[0].mxu0
    %v1176 = vpop.f32.mrb[0].mxu0
    %v1177 = vadd.f32 %v1032, %v1176
    %v1178 = vpop.f32.mrb[0].mxu0
    %1179 = vmatprep.mubr.bf16.mxu0 0
    %1180 = vmatmul.mubr.bf16.gmra.mrb[0].mxu0 %v114
    %v1181 = vpop.f32.mrb[0].mxu0
    %v1182 = vadd.f32 %v1037, %v1181
    %v1183 = vpop.f32.mrb[0].mxu0
    %v1184 = vpop.f32.mrb[0].mxu0
    %v1185 = vadd.f32 %v1040, %v1184
    %v1186 = vpop.f32.mrb[0].mxu0
    %1187 = vmatprep.mubr.bf16.mxu0 0
    %1188 = vmatmul.mubr.bf16.gmra.mrb[0].mxu0 %v115
    %v1189 = vpop.f32.mrb[0].mxu0
    %v1190 = vadd.f32 %v1045, %v1189
    %v1191 = vpop.f32.mrb[0].mxu0
    %v1192 = vpop.f32.mrb[0].mxu0
    %v1193 = vadd.f32 %v1048, %v1192
    %v1194 = vpop.f32.mrb[0].mxu0
    %1195 = vmatprep.mubr.bf16.mxu0 0
    %1196 = vmatmul.mubr.bf16.gmra.mrb[0].mxu0 %v116
    %v1197 = vpop.f32.mrb[0].mxu0
    %v1198 = vadd.f32 %v1053, %v1197
    %v1199 = vpop.f32.mrb[0].mxu0
    %v1200 = vpop.f32.mrb[0].mxu0
    %v1201 = vadd.f32 %v1056, %v1200
    %v1202 = vpop.f32.mrb[0].mxu0
    %1203 = vmatprep.mubr.bf16.mxu0 0
    %1204 = vmatmul.mubr.bf16.gmra.mrb[0].mxu0 %v117
    %v1205 = vpop.f32.mrb[0].mxu0
    %v1206 = vadd.f32 %v1061, %v1205
    %v1207 = vpop.f32.mrb[0].mxu0
    %v1208 = vpop.f32.mrb[0].mxu0
    %v1209 = vadd.f32 %v1064, %v1208
    %v1210 = vpop.f32.mrb[0].mxu0
    %1211 = vmatprep.mubr.bf16.mxu0 0
    %1212 = vmatmul.mubr.bf16.gmra.mrb[0].mxu0 %v118
    %v1213 = vpop.f32.mrb[0].mxu0
    %v1214 = vadd.f32 %v1069, %v1213
    %v1215 = vpop.f32.mrb[0].mxu0
    %v1216 = vpop.f32.mrb[0].mxu0
    %v1217 = vadd.f32 %v1072, %v1216
    %v1218 = vpop.f32.mrb[0].mxu0
    %1219 = vmatprep.mubr.bf16.mxu0 0
    %1220 = vmatmul.mubr.bf16.gmra.mrb[0].mxu0 %v119
    %v1221 = vpop.f32.mrb[0].mxu0
    %v1222 = vadd.f32 %v1077, %v1221
    %v1223 = vpop.f32.mrb[0].mxu0
    %v1224 = vpop.f32.mrb[0].mxu0
    %v1225 = vadd.f32 %v1080, %v1224
    %v1226 = vpop.f32.mrb[0].mxu0
    %1227 = vmatprep.mubr.bf16.mxu0 0
    %1228 = vmatmul.mubr.bf16.gmra.mrb[0].mxu0 %v120
    %v1229 = vpop.f32.mrb[0].mxu0
    %v1230 = vadd.f32 %v1085, %v1229
    %v1231 = vpop.f32.mrb[0].mxu0
    %v1232 = vpop.f32.mrb[0].mxu0
    %v1233 = vadd.f32 %v1088, %v1232
    %v1234 = vpop.f32.mrb[0].mxu0
    %1235 = vdwg.mxu0
    %v1236 = vlaneseq
    %v1237 = vshrl.u32 %v1236, 7
    %v1238 = vsub.s32 0, %v1237
    %v1239 = vrot.slane %v91, %v1238
    %v1240 = vadd.f32 %v1174, %v1239
    %v1241 = vadd.f32 %v1177, %v1239
    %v1242 = vadd.f32 %v1182, %v1239
    %v1243 = vadd.f32 %v1185, %v1239
    %v1244 = vadd.f32 %v1190, %v1239
    %v1245 = vadd.f32 %v1193, %v1239
    %v1246 = vadd.f32 %v1198, %v1239
    %v1247 = vadd.f32 %v1201, %v1239
    %v1248 = vadd.f32 %v1206, %v1239
    %v1249 = vadd.f32 %v1209, %v1239
    %v1250 = vadd.f32 %v1214, %v1239
    %v1251 = vadd.f32 %v1217, %v1239
    %v1252 = vadd.f32 %v1222, %v1239
    %v1253 = vadd.f32 %v1225, %v1239
    %v1254 = vadd.f32 %v1230, %v1239
    %v1255 = vadd.f32 %v1233, %v1239
    %vm1256 = vcmp.ge.f32.partialorder %v1240, 0.0
    %vm1257 = vcmp.ge.f32.partialorder %v1241, 0.0
    %vm1258 = vcmp.ge.f32.partialorder %v1242, 0.0
    %vm1259 = vcmp.ge.f32.partialorder %v1243, 0.0
    %vm1260 = vcmp.ge.f32.partialorder %v1244, 0.0
    %vm1261 = vcmp.ge.f32.partialorder %v1245, 0.0
    %vm1262 = vcmp.ge.f32.partialorder %v1246, 0.0
    %vm1263 = vcmp.ge.f32.partialorder %v1247, 0.0
    %vm1264 = vcmp.ge.f32.partialorder %v1248, 0.0
    %vm1265 = vcmp.ge.f32.partialorder %v1249, 0.0
    %vm1266 = vcmp.ge.f32.partialorder %v1250, 0.0
    %vm1267 = vcmp.ge.f32.partialorder %v1251, 0.0
    %vm1268 = vcmp.ge.f32.partialorder %v1252, 0.0
    %vm1269 = vcmp.ge.f32.partialorder %v1253, 0.0
    %vm1270 = vcmp.ge.f32.partialorder %v1254, 0.0
    %vm1271 = vcmp.ge.f32.partialorder %v1255, 0.0
    %v1272 = vlaneseq
    %v1273 = vshrl.u32 %v1272, 7
    %v1274 = vsub.s32 0, %v1273
    %v1275 = vrot.slane %v92, %v1274
    %v1276 = vmul.f32 %v1275, %v1240
    %v1277 = vmul.f32 %v1275, %v1241
    %v1278 = vmul.f32 %v1275, %v1242
    %v1279 = vmul.f32 %v1275, %v1243
    %v1280 = vmul.f32 %v1275, %v1244
    %v1281 = vmul.f32 %v1275, %v1245
    %v1282 = vmul.f32 %v1275, %v1246
    %v1283 = vmul.f32 %v1275, %v1247
    %v1284 = vmul.f32 %v1275, %v1248
    %v1285 = vmul.f32 %v1275, %v1249
    %v1286 = vmul.f32 %v1275, %v1250
    %v1287 = vmul.f32 %v1275, %v1251
    %v1288 = vmul.f32 %v1275, %v1252
    %v1289 = vmul.f32 %v1275, %v1253
    %v1290 = vmul.f32 %v1275, %v1254
    %v1291 = vmul.f32 %v1275, %v1255
    %v1292 = vsel %vm1256, %v1240, %v1276
    %v1293 = vsel %vm1257, %v1241, %v1277
    %v1294 = vsel %vm1258, %v1242, %v1278
    %v1295 = vsel %vm1259, %v1243, %v1279
    %v1296 = vsel %vm1260, %v1244, %v1280
    %v1297 = vsel %vm1261, %v1245, %v1281
    %v1298 = vsel %vm1262, %v1246, %v1282
    %v1299 = vsel %vm1263, %v1247, %v1283
    %v1300 = vsel %vm1264, %v1248, %v1284
    %v1301 = vsel %vm1265, %v1249, %v1285
    %v1302 = vsel %vm1266, %v1250, %v1286
    %v1303 = vsel %vm1267, %v1251, %v1287
    %v1304 = vsel %vm1268, %v1252, %v1288
    %v1305 = vsel %vm1269, %v1253, %v1289
    %v1306 = vsel %vm1270, %v1254, %v1290
    %v1307 = vsel %vm1271, %v1255, %v1291
    %v1308 = vlaneseq
    %v1309 = vshrl.u32 %v1308, 7
    %v1310 = vsub.s32 0, %v1309
    %v1311 = vrot.slane %v93, %v1310
    %v1312 = vmul.f32 %v1292, %v1311
    %v1313 = vmul.f32 %v1293, %v1311
    %v1314 = vmul.f32 %v1294, %v1311
    %v1315 = vmul.f32 %v1295, %v1311
    %v1316 = vmul.f32 %v1296, %v1311
    %v1317 = vmul.f32 %v1297, %v1311
    %v1318 = vmul.f32 %v1298, %v1311
    %v1319 = vmul.f32 %v1299, %v1311
    %v1320 = vmul.f32 %v1300, %v1311
    %v1321 = vmul.f32 %v1301, %v1311
    %v1322 = vmul.f32 %v1302, %v1311
    %v1323 = vmul.f32 %v1303, %v1311
    %v1324 = vmul.f32 %v1304, %v1311
    %v1325 = vmul.f32 %v1305, %v1311
    %v1326 = vmul.f32 %v1306, %v1311
    %v1327 = vmul.f32 %v1307, %v1311
    %1328 = vadd.xlane.f32.xlu0 %v1312
    %v1329 = vpop.xlane.xlu0 %1328
    %1330 = vadd.xlane.f32.xlu0 %v1313
    %v1331 = vpop.xlane.xlu0 %1330
    %1332 = vadd.xlane.f32.xlu0 %v1314
    %v1333 = vpop.xlane.xlu0 %1332
    %1334 = vadd.xlane.f32.xlu0 %v1315
    %v1335 = vpop.xlane.xlu0 %1334
    %1336 = vadd.xlane.f32.xlu0 %v1316
    %v1337 = vpop.xlane.xlu0 %1336
    %1338 = vadd.xlane.f32.xlu0 %v1317
    %v1339 = vpop.xlane.xlu0 %1338
    %1340 = vadd.xlane.f32.xlu0 %v1318
    %v1341 = vpop.xlane.xlu0 %1340
    %1342 = vadd.xlane.f32.xlu0 %v1319
    %v1343 = vpop.xlane.xlu0 %1342
    %1344 = vadd.xlane.f32.xlu0 %v1320
    %v1345 = vpop.xlane.xlu0 %1344
    %1346 = vadd.xlane.f32.xlu0 %v1321
    %v1347 = vpop.xlane.xlu0 %1346
    %1348 = vadd.xlane.f32.xlu0 %v1322
    %v1349 = vpop.xlane.xlu0 %1348
    %1350 = vadd.xlane.f32.xlu0 %v1323
    %v1351 = vpop.xlane.xlu0 %1350
    %1352 = vadd.xlane.f32.xlu0 %v1324
    %v1353 = vpop.xlane.xlu0 %1352
    %1354 = vadd.xlane.f32.xlu0 %v1325
    %v1355 = vpop.xlane.xlu0 %1354
    %1356 = vadd.xlane.f32.xlu0 %v1326
    %v1357 = vpop.xlane.xlu0 %1356
    %1358 = vadd.xlane.f32.xlu0 %v1327
    %v1359 = vpop.xlane.xlu0 %1358
    %v1360 = vmax.f32 %v1329, %v1337
    %v1361 = vmax.f32 %v1331, %v1339
    %v1362 = vmax.f32 %v1333, %v1341
    %v1363 = vmax.f32 %v1335, %v1343
    %v1364 = vmax.f32 %v1360, %v1345
    %v1365 = vmax.f32 %v1361, %v1347
    %v1366 = vmax.f32 %v1362, %v1349
    %v1367 = vmax.f32 %v1363, %v1351
    %v1368 = vmax.f32 %v1364, %v1353
    %v1369 = vmax.f32 %v1365, %v1355
    %v1370 = vmax.f32 %v1366, %v1357
    %v1371 = vmax.f32 %v1367, %v1359
    %v1372 = vmax.f32 %v1368, %v1369
    %v1373 = vmax.f32 %v1370, %v1371
    %v1374 = vmax.f32 %v1372, %v1373
    %v1375 = vrot.slane %v1374, 4
    %v1376 = vmax.f32 %v1374, %v1375
    %v1377 = vrot.slane %v1376, 2
    %v1378 = vmax.f32 %v1376, %v1377
    %v1379 = vrot.slane %v1378, 1
    %v1380 = vmax.f32 %v1378, %v1379
    %v1381 = vsub.f32 %v1329, %v1380
    %v1382 = vsub.f32 %v1331, %v1380
    %v1383 = vsub.f32 %v1333, %v1380
    %v1384 = vsub.f32 %v1335, %v1380
    %v1385 = vsub.f32 %v1337, %v1380
    %v1386 = vsub.f32 %v1339, %v1380
    %v1387 = vsub.f32 %v1341, %v1380
    %v1388 = vsub.f32 %v1343, %v1380
    %v1389 = vsub.f32 %v1345, %v1380
    %v1390 = vsub.f32 %v1347, %v1380
    %v1391 = vsub.f32 %v1349, %v1380
    %v1392 = vsub.f32 %v1351, %v1380
    %v1393 = vsub.f32 %v1353, %v1380
    %v1394 = vsub.f32 %v1355, %v1380
    %v1395 = vsub.f32 %v1357, %v1380
    %v1396 = vsub.f32 %v1359, %v1380
    %v1397 = vmul.f32 %v1381, 1.442695
    %v1398 = vpow.pop %v1397
    %v1399 = vmul.f32 %v1382, 1.442695
    %v1400 = vpow.pop %v1399
    %v1401 = vmul.f32 %v1383, 1.442695
    %v1402 = vpow.pop %v1401
    %v1403 = vmul.f32 %v1384, 1.442695
    %v1404 = vpow.pop %v1403
    %v1405 = vmul.f32 %v1385, 1.442695
    %v1406 = vpow.pop %v1405
    %v1407 = vmul.f32 %v1386, 1.442695
    %v1408 = vpow.pop %v1407
    %v1409 = vmul.f32 %v1387, 1.442695
    %v1410 = vpow.pop %v1409
    %v1411 = vmul.f32 %v1388, 1.442695
    %v1412 = vpow.pop %v1411
    %v1413 = vmul.f32 %v1389, 1.442695
    %v1414 = vpow.pop %v1413
    %v1415 = vmul.f32 %v1390, 1.442695
    %v1416 = vpow.pop %v1415
    %v1417 = vmul.f32 %v1391, 1.442695
    %v1418 = vpow.pop %v1417
    %v1419 = vmul.f32 %v1392, 1.442695
    %v1420 = vpow.pop %v1419
    %v1421 = vmul.f32 %v1393, 1.442695
    %v1422 = vpow.pop %v1421
    %v1423 = vmul.f32 %v1394, 1.442695
    %v1424 = vpow.pop %v1423
    %v1425 = vmul.f32 %v1395, 1.442695
    %v1426 = vpow.pop %v1425
    %v1427 = vmul.f32 %v1396, 1.442695
    %v1428 = vpow.pop %v1427
    %1429 = vmatprep.subr.mxu0 0.0
    %1430 = vmatpush1.msra.mxu0 %v1398
    %1431 = vmatprep.subr.mxu0 0.0
    %1432 = vmatpush1.msra.mxu0 %v1400
    %1433 = vmatprep.subr.mxu0 0.0
    %1434 = vmatpush1.msra.mxu0 %v1402
    %1435 = vmatprep.subr.mxu0 0.0
    %1436 = vmatpush1.msra.mxu0 %v1404
    %1437 = vmatprep.subr.mxu0 0.0
    %1438 = vmatpush1.msra.mxu0 %v1406
    %1439 = vmatprep.subr.mxu0 0.0
    %1440 = vmatpush1.msra.mxu0 %v1408
    %1441 = vmatprep.subr.mxu0 0.0
    %1442 = vmatpush1.msra.mxu0 %v1410
    %1443 = vmatprep.subr.mxu0 0.0
    %1444 = vmatpush1.msra.mxu0 %v1412
    %1445 = vmatprep.subr.mxu0 0.0
    %1446 = vmatpush1.msra.mxu0 %v1414
    %1447 = vmatprep.subr.mxu0 0.0
    %1448 = vmatpush1.msra.mxu0 %v1416
    %1449 = vmatprep.subr.mxu0 0.0
    %1450 = vmatpush1.msra.mxu0 %v1418
    %1451 = vmatprep.subr.mxu0 0.0
    %1452 = vmatpush1.msra.mxu0 %v1420
    %1453 = vmatprep.subr.mxu0 0.0
    %1454 = vmatpush1.msra.mxu0 %v1422
    %1455 = vmatprep.subr.mxu0 0.0
    %1456 = vmatpush1.msra.mxu0 %v1424
    %1457 = vmatprep.subr.mxu0 0.0
    %1458 = vmatpush1.msra.mxu0 %v1426
    %1459 = vmatprep.subr.mxu0 0.0
    %1460 = vmatpush1.msra.mxu0 %v1428
    %1461 = vmatprep.subr.mxu0 0.0
    %1462 = vmatpush1.msra.mxu0 0.0
    %1463 = vmatprep.subr.mxu0 0.0
    %1464 = vmatpush1.msra.mxu0 0.0
    %1465 = vmatprep.subr.mxu0 0.0
    %1466 = vmatpush1.msra.mxu0 0.0
    %1467 = vmatprep.subr.mxu0 0.0
    %1468 = vmatpush1.msra.mxu0 0.0
    %1469 = vmatprep.subr.mxu0 0.0
    %1470 = vmatpush1.msra.mxu0 0.0
    %1471 = vmatprep.subr.mxu0 0.0
    %1472 = vmatpush1.msra.mxu0 0.0
    %1473 = vmatprep.subr.mxu0 0.0
    %1474 = vmatpush1.msra.mxu0 0.0
    %1475 = vmatprep.subr.mxu0 0.0
    %1476 = vmatpush1.msra.mxu0 0.0
    %1477 = vmatprep.subr.mxu0 0.0
    %1478 = vmatpush1.msra.mxu0 0.0
    %1479 = vmatprep.subr.mxu0 0.0
    %1480 = vmatpush1.msra.mxu0 0.0
    %1481 = vmatprep.subr.mxu0 0.0
    %1482 = vmatpush1.msra.mxu0 0.0
    %1483 = vmatprep.subr.mxu0 0.0
    %1484 = vmatpush1.msra.mxu0 0.0
    %1485 = vmatprep.subr.mxu0 0.0
    %1486 = vmatpush1.msra.mxu0 0.0
    %1487 = vmatprep.subr.mxu0 0.0
    %1488 = vmatpush1.msra.mxu0 0.0
    %1489 = vmatprep.subr.mxu0 0.0
    %1490 = vmatpush1.msra.mxu0 0.0
    %1491 = vmatprep.subr.mxu0 0.0
    %1492 = vmatpush1.msra.mxu0 0.0
    %1493 = vmatprep.mubr.f32.mxu0 0.0
    %1494 = vmatmul.mubr.f32.gmra.mrb[0].mxu0 %v137
    %v1495 = vpop.f32.mrb[0].mxu0
    %v1496 = vadd.f32 0.0, %v1495
    %v1497 = vpop.f32.mrb[0].mxu0
    %1498 = vdwg.mxu0
    %v1499 = vmul.f32 %v1398, %v97
    %v1500 = vmul.f32 %v1400, %v98
    %v1501 = vmul.f32 %v1402, %v99
    %v1502 = vmul.f32 %v1404, %v100
    %v1503 = vmul.f32 %v1406, %v101
    %v1504 = vmul.f32 %v1408, %v102
    %v1505 = vmul.f32 %v1410, %v103
    %v1506 = vmul.f32 %v1412, %v104
    %v1507 = vmul.f32 %v1414, %v105
    %v1508 = vmul.f32 %v1416, %v106
    %v1509 = vmul.f32 %v1418, %v107
    %v1510 = vmul.f32 %v1420, %v108
    %v1511 = vmul.f32 %v1422, %v109
    %v1512 = vmul.f32 %v1424, %v110
    %v1513 = vmul.f32 %v1426, %v111
    %v1514 = vmul.f32 %v1428, %v112
    %1515 = vmatprep.subr.mxu0 0.0
    %1516 = vmatpush1.msra.mxu0 %v1499
    %1517 = vmatprep.subr.mxu0 0.0
    %1518 = vmatpush1.msra.mxu0 %v1500
    %1519 = vmatprep.subr.mxu0 0.0
    %1520 = vmatpush1.msra.mxu0 %v1501
    %1521 = vmatprep.subr.mxu0 0.0
    %1522 = vmatpush1.msra.mxu0 %v1502
    %1523 = vmatprep.subr.mxu0 0.0
    %1524 = vmatpush1.msra.mxu0 %v1503
    %1525 = vmatprep.subr.mxu0 0.0
    %1526 = vmatpush1.msra.mxu0 %v1504
    %1527 = vmatprep.subr.mxu0 0.0
    %1528 = vmatpush1.msra.mxu0 %v1505
    %1529 = vmatprep.subr.mxu0 0.0
    %1530 = vmatpush1.msra.mxu0 %v1506
    %1531 = vmatprep.subr.mxu0 0.0
    %1532 = vmatpush1.msra.mxu0 %v1507
    %1533 = vmatprep.subr.mxu0 0.0
    %1534 = vmatpush1.msra.mxu0 %v1508
    %1535 = vmatprep.subr.mxu0 0.0
    %1536 = vmatpush1.msra.mxu0 %v1509
    %1537 = vmatprep.subr.mxu0 0.0
    %1538 = vmatpush1.msra.mxu0 %v1510
    %1539 = vmatprep.subr.mxu0 0.0
    %1540 = vmatpush1.msra.mxu0 %v1511
    %1541 = vmatprep.subr.mxu0 0.0
    %1542 = vmatpush1.msra.mxu0 %v1512
    %1543 = vmatprep.subr.mxu0 0.0
    %1544 = vmatpush1.msra.mxu0 %v1513
    %1545 = vmatprep.subr.mxu0 0.0
    %1546 = vmatpush1.msra.mxu0 %v1514
    %1547 = vmatprep.subr.mxu0 0.0
    %1548 = vmatpush1.msra.mxu0 0.0
    %1549 = vmatprep.subr.mxu0 0.0
    %1550 = vmatpush1.msra.mxu0 0.0
    %1551 = vmatprep.subr.mxu0 0.0
    %1552 = vmatpush1.msra.mxu0 0.0
    %1553 = vmatprep.subr.mxu0 0.0
    %1554 = vmatpush1.msra.mxu0 0.0
    %1555 = vmatprep.subr.mxu0 0.0
    %1556 = vmatpush1.msra.mxu0 0.0
    %1557 = vmatprep.subr.mxu0 0.0
    %1558 = vmatpush1.msra.mxu0 0.0
    %1559 = vmatprep.subr.mxu0 0.0
    %1560 = vmatpush1.msra.mxu0 0.0
    %1561 = vmatprep.subr.mxu0 0.0
    %1562 = vmatpush1.msra.mxu0 0.0
    %1563 = vmatprep.subr.mxu0 0.0
    %1564 = vmatpush1.msra.mxu0 0.0
    %1565 = vmatprep.subr.mxu0 0.0
    %1566 = vmatpush1.msra.mxu0 0.0
    %1567 = vmatprep.subr.mxu0 0.0
    %1568 = vmatpush1.msra.mxu0 0.0
    %1569 = vmatprep.subr.mxu0 0.0
    %1570 = vmatpush1.msra.mxu0 0.0
    %1571 = vmatprep.subr.mxu0 0.0
    %1572 = vmatpush1.msra.mxu0 0.0
    %1573 = vmatprep.subr.mxu0 0.0
    %1574 = vmatpush1.msra.mxu0 0.0
    %1575 = vmatprep.subr.mxu0 0.0
    %1576 = vmatpush1.msra.mxu0 0.0
    %1577 = vmatprep.subr.mxu0 0.0
    %1578 = vmatpush1.msra.mxu0 0.0
    %1579 = vmatprep.mubr.f32.mxu0 0.0
    %1580 = vmatmul.mubr.f32.gmra.mrb[0].mxu0 %v137
    %v1581 = vpop.f32.mrb[0].mxu0
    %v1582 = vadd.f32 0.0, %v1581
    %v1583 = vpop.f32.mrb[0].mxu0
    %1584 = vdwg.mxu0
    %v1585 = vmul.f32 %v1398, %v890
    %v1586 = vmul.f32 %v1400, %v891
    %v1587 = vmul.f32 %v1402, %v892
    %v1588 = vmul.f32 %v1404, %v893
    %v1589 = vmul.f32 %v1406, %v894
    %v1590 = vmul.f32 %v1408, %v895
    %v1591 = vmul.f32 %v1410, %v896
    %v1592 = vmul.f32 %v1412, %v897
    %v1593 = vmul.f32 %v1414, %v898
    %v1594 = vmul.f32 %v1416, %v899
    %v1595 = vmul.f32 %v1418, %v900
    %v1596 = vmul.f32 %v1420, %v901
    %v1597 = vmul.f32 %v1422, %v902
    %v1598 = vmul.f32 %v1424, %v903
    %v1599 = vmul.f32 %v1426, %v904
    %v1600 = vmul.f32 %v1428, %v905
    %1601 = vmatprep.subr.mxu0 0.0
    %1602 = vmatpush1.msra.mxu0 %v1585
    %1603 = vmatprep.subr.mxu0 0.0
    %1604 = vmatpush1.msra.mxu0 %v1586
    %1605 = vmatprep.subr.mxu0 0.0
    %1606 = vmatpush1.msra.mxu0 %v1587
    %1607 = vmatprep.subr.mxu0 0.0
    %1608 = vmatpush1.msra.mxu0 %v1588
    %1609 = vmatprep.subr.mxu0 0.0
    %1610 = vmatpush1.msra.mxu0 %v1589
    %1611 = vmatprep.subr.mxu0 0.0
    %1612 = vmatpush1.msra.mxu0 %v1590
    %1613 = vmatprep.subr.mxu0 0.0
    %1614 = vmatpush1.msra.mxu0 %v1591
    %1615 = vmatprep.subr.mxu0 0.0
    %1616 = vmatpush1.msra.mxu0 %v1592
    %1617 = vmatprep.subr.mxu0 0.0
    %1618 = vmatpush1.msra.mxu0 %v1593
    %1619 = vmatprep.subr.mxu0 0.0
    %1620 = vmatpush1.msra.mxu0 %v1594
    %1621 = vmatprep.subr.mxu0 0.0
    %1622 = vmatpush1.msra.mxu0 %v1595
    %1623 = vmatprep.subr.mxu0 0.0
    %1624 = vmatpush1.msra.mxu0 %v1596
    %1625 = vmatprep.subr.mxu0 0.0
    %1626 = vmatpush1.msra.mxu0 %v1597
    %1627 = vmatprep.subr.mxu0 0.0
    %1628 = vmatpush1.msra.mxu0 %v1598
    %1629 = vmatprep.subr.mxu0 0.0
    %1630 = vmatpush1.msra.mxu0 %v1599
    %1631 = vmatprep.subr.mxu0 0.0
    %1632 = vmatpush1.msra.mxu0 %v1600
    %1633 = vmatprep.subr.mxu0 0.0
    %1634 = vmatpush1.msra.mxu0 0.0
    %1635 = vmatprep.subr.mxu0 0.0
    %1636 = vmatpush1.msra.mxu0 0.0
    %1637 = vmatprep.subr.mxu0 0.0
    %1638 = vmatpush1.msra.mxu0 0.0
    %1639 = vmatprep.subr.mxu0 0.0
    %1640 = vmatpush1.msra.mxu0 0.0
    %1641 = vmatprep.subr.mxu0 0.0
    %1642 = vmatpush1.msra.mxu0 0.0
    %1643 = vmatprep.subr.mxu0 0.0
    %1644 = vmatpush1.msra.mxu0 0.0
    %1645 = vmatprep.subr.mxu0 0.0
    %1646 = vmatpush1.msra.mxu0 0.0
    %1647 = vmatprep.subr.mxu0 0.0
    %1648 = vmatpush1.msra.mxu0 0.0
    %1649 = vmatprep.subr.mxu0 0.0
    %1650 = vmatpush1.msra.mxu0 0.0
    %1651 = vmatprep.subr.mxu0 0.0
    %1652 = vmatpush1.msra.mxu0 0.0
    %1653 = vmatprep.subr.mxu0 0.0
    %1654 = vmatpush1.msra.mxu0 0.0
    %1655 = vmatprep.subr.mxu0 0.0
    %1656 = vmatpush1.msra.mxu0 0.0
    %1657 = vmatprep.subr.mxu0 0.0
    %1658 = vmatpush1.msra.mxu0 0.0
    %1659 = vmatprep.subr.mxu0 0.0
    %1660 = vmatpush1.msra.mxu0 0.0
    %1661 = vmatprep.subr.mxu0 0.0
    %1662 = vmatpush1.msra.mxu0 0.0
    %1663 = vmatprep.subr.mxu0 0.0
    %1664 = vmatpush1.msra.mxu0 0.0
    %1665 = vmatprep.mubr.f32.mxu0 0.0
    %1666 = vmatmul.mubr.f32.gmra.mrb[0].mxu0 %v137
    %v1667 = vpop.f32.mrb[0].mxu0
    %v1668 = vadd.f32 0.0, %v1667
    %v1669 = vpop.f32.mrb[0].mxu0
    %1670 = vdwg.mxu0
    %v1671 = vrcp.pop %v1496
    %1673 = vset.pattern.permute.xlu0 0
    %1674 = vperm.xlu0 %1673, %v1671
    %v1675 = vpop.permute.xlu0 %1674
    %v1677 = vmul.f32 %v1582, %v1675
    %v1678 = vmul.f32 %v1668, %v1675
    %v1679 = vpack.c.bf16 %v1677, %v1677
    %v1680 = vld [vmem:[#allocation8 + $0x140] sm:$0xf]
    %v1681 = vld [vmem:[#allocation8 + $0x144] sm:$0xf]
    %v1682 = vld [vmem:[#allocation8 + $0x148] sm:$0xf]
    %v1683 = vld [vmem:[#allocation8 + $0x14c] sm:$0xf]
    %v1684 = vld [vmem:[#allocation8 + $0x150] sm:$0xf]
    %v1685 = vld [vmem:[#allocation8 + $0x154] sm:$0xf]
    %v1686 = vld [vmem:[#allocation8 + $0x158] sm:$0xf]
    %v1687 = vld [vmem:[#allocation8 + $0x15c] sm:$0xf]
    %v1688 = vld [vmem:[#allocation8 + $0x160] sm:$0xf]
    %v1689 = vld [vmem:[#allocation8 + $0x164] sm:$0xf]
    %v1690 = vld [vmem:[#allocation8 + $0x168] sm:$0xf]
    %v1691 = vld [vmem:[#allocation8 + $0x16c] sm:$0xf]
    %v1692 = vld [vmem:[#allocation8 + $0x170] sm:$0xf]
    %v1693 = vld [vmem:[#allocation8 + $0x174] sm:$0xf]
    %v1694 = vld [vmem:[#allocation8 + $0x178] sm:$0xf]
    %v1695 = vld [vmem:[#allocation8 + $0x17c] sm:$0xf]
    %v1696 = vpack.c.bf16 %v1678, %v1678
    %v1697 = vld [vmem:[#allocation8 + $0x180] sm:$0xf]
    %v1698 = vld [vmem:[#allocation8 + $0x184] sm:$0xf]
    %v1699 = vld [vmem:[#allocation8 + $0x188] sm:$0xf]
    %v1700 = vld [vmem:[#allocation8 + $0x18c] sm:$0xf]
    %v1701 = vld [vmem:[#allocation8 + $0x190] sm:$0xf]
    %v1702 = vld [vmem:[#allocation8 + $0x194] sm:$0xf]
    %v1703 = vld [vmem:[#allocation8 + $0x198] sm:$0xf]
    %v1704 = vld [vmem:[#allocation8 + $0x19c] sm:$0xf]
    %v1705 = vld [vmem:[#allocation8 + $0x1a0] sm:$0xf]
    %v1706 = vld [vmem:[#allocation8 + $0x1a4] sm:$0xf]
    %v1707 = vld [vmem:[#allocation8 + $0x1a8] sm:$0xf]
    %v1708 = vld [vmem:[#allocation8 + $0x1ac] sm:$0xf]
    %v1709 = vld [vmem:[#allocation8 + $0x1b0] sm:$0xf]
    %v1710 = vld [vmem:[#allocation8 + $0x1b4] sm:$0xf]
    %v1711 = vld [vmem:[#allocation8 + $0x1b8] sm:$0xf]
    %v1712 = vld [vmem:[#allocation8 + $0x1bc] sm:$0xf]
    %v1729 = vunpack.c.l.b16 %v1697
    %v1730 = vunpack.c.l.b16 %v1698
    %v1731 = vunpack.c.l.b16 %v1699
    %v1732 = vunpack.c.l.b16 %v1700
    %v1733 = vunpack.c.l.b16 %v1701
    %v1734 = vunpack.c.l.b16 %v1702
    %v1735 = vunpack.c.l.b16 %v1703
    %v1736 = vunpack.c.l.b16 %v1704
    %v1737 = vunpack.c.l.b16 %v1705
    %v1738 = vunpack.c.l.b16 %v1706
    %v1739 = vunpack.c.l.b16 %v1707
    %v1740 = vunpack.c.l.b16 %v1708
    %v1741 = vunpack.c.l.b16 %v1709
    %v1742 = vunpack.c.l.b16 %v1710
    %v1743 = vunpack.c.l.b16 %v1711
    %v1744 = vunpack.c.l.b16 %v1712
    %v1745 = vpack.c.b16 %v1730, %v1729
    %v1746 = vpack.c.b16 %v1732, %v1731
    %v1747 = vpack.c.b16 %v1734, %v1733
    %v1748 = vpack.c.b16 %v1736, %v1735
    %v1749 = vpack.c.b16 %v1738, %v1737
    %v1750 = vpack.c.b16 %v1740, %v1739
    %v1751 = vpack.c.b16 %v1742, %v1741
    %v1752 = vpack.c.b16 %v1744, %v1743
    %1761 = vmatprep.subr.bf16.mxu0 0
    %1762 = vmatpush1.bf16.msra.mxu0 %v1745
    %1763 = vmatprep.subr.bf16.mxu0 0
    %1764 = vmatpush1.bf16.msra.mxu0 %v1746
    %1765 = vmatprep.subr.bf16.mxu0 0
    %1766 = vmatpush1.bf16.msra.mxu0 %v1747
    %1767 = vmatprep.subr.bf16.mxu0 0
    %1768 = vmatpush1.bf16.msra.mxu0 %v1748
    %1769 = vmatprep.subr.bf16.mxu0 0
    %1770 = vmatpush1.bf16.msra.mxu0 %v1749
    %1771 = vmatprep.subr.bf16.mxu0 0
    %1772 = vmatpush1.bf16.msra.mxu0 %v1750
    %1773 = vmatprep.subr.bf16.mxu0 0
    %1774 = vmatpush1.bf16.msra.mxu0 %v1751
    %1775 = vmatprep.subr.bf16.mxu0 0
    %1776 = vmatpush1.bf16.msra.mxu0 %v1752
    %1777 = vmatprep.subr.bf16.mxu0 0
    %1778 = vmatpush1.bf16.msra.mxu0 0
    %1779 = vmatprep.subr.bf16.mxu0 0
    %1780 = vmatpush1.bf16.msra.mxu0 0
    %1781 = vmatprep.subr.bf16.mxu0 0
    %1782 = vmatpush1.bf16.msra.mxu0 0
    %1783 = vmatprep.subr.bf16.mxu0 0
    %1784 = vmatpush1.bf16.msra.mxu0 0
    %1785 = vmatprep.subr.bf16.mxu0 0
    %1786 = vmatpush1.bf16.msra.mxu0 0
    %1787 = vmatprep.subr.bf16.mxu0 0
    %1788 = vmatpush1.bf16.msra.mxu0 0
    %1789 = vmatprep.subr.bf16.mxu0 0
    %1790 = vmatpush1.bf16.msra.mxu0 0
    %1791 = vmatprep.subr.bf16.mxu0 0
    %1792 = vmatpush1.bf16.msra.mxu0 0
    %1793 = vmatprep.mubr.bf16.mxu0 0
    %1794 = vmatmul.mubr.bf16.gmra.mrb[0].mxu0 %v1696
    %v1795 = vpop.f32.mrb[0].mxu0
    %v1796 = vadd.f32 0.0, %v1795
    %v1797 = vpop.f32.mrb[0].mxu0
    %v1798 = vpop.f32.mrb[0].mxu0
    %v1799 = vpop.f32.mrb[0].mxu0
    %1800 = vdwg.mxu0
    %v1817 = vunpack.c.l.b16 %v1680
    %v1818 = vunpack.c.l.b16 %v1681
    %v1819 = vunpack.c.l.b16 %v1682
    %v1820 = vunpack.c.l.b16 %v1683
    %v1821 = vunpack.c.l.b16 %v1684
    %v1822 = vunpack.c.l.b16 %v1685
    %v1823 = vunpack.c.l.b16 %v1686
    %v1824 = vunpack.c.l.b16 %v1687
    %v1825 = vunpack.c.l.b16 %v1688
    %v1826 = vunpack.c.l.b16 %v1689
    %v1827 = vunpack.c.l.b16 %v1690
    %v1828 = vunpack.c.l.b16 %v1691
    %v1829 = vunpack.c.l.b16 %v1692
    %v1830 = vunpack.c.l.b16 %v1693
    %v1831 = vunpack.c.l.b16 %v1694
    %v1832 = vunpack.c.l.b16 %v1695
    %v1833 = vpack.c.b16 %v1818, %v1817
    %v1834 = vpack.c.b16 %v1820, %v1819
    %v1835 = vpack.c.b16 %v1822, %v1821
    %v1836 = vpack.c.b16 %v1824, %v1823
    %v1837 = vpack.c.b16 %v1826, %v1825
    %v1838 = vpack.c.b16 %v1828, %v1827
    %v1839 = vpack.c.b16 %v1830, %v1829
    %v1840 = vpack.c.b16 %v1832, %v1831
    %1849 = vmatprep.subr.bf16.mxu0 0
    %1850 = vmatpush1.bf16.msra.mxu0 %v1833
    %1851 = vmatprep.subr.bf16.mxu0 0
    %1852 = vmatpush1.bf16.msra.mxu0 %v1834
    %1853 = vmatprep.subr.bf16.mxu0 0
    %1854 = vmatpush1.bf16.msra.mxu0 %v1835
    %1855 = vmatprep.subr.bf16.mxu0 0
    %1856 = vmatpush1.bf16.msra.mxu0 %v1836
    %1857 = vmatprep.subr.bf16.mxu0 0
    %1858 = vmatpush1.bf16.msra.mxu0 %v1837
    %1859 = vmatprep.subr.bf16.mxu0 0
    %1860 = vmatpush1.bf16.msra.mxu0 %v1838
    %1861 = vmatprep.subr.bf16.mxu0 0
    %1862 = vmatpush1.bf16.msra.mxu0 %v1839
    %1863 = vmatprep.subr.bf16.mxu0 0
    %1864 = vmatpush1.bf16.msra.mxu0 %v1840
    %1865 = vmatprep.subr.bf16.mxu0 0
    %1866 = vmatpush1.bf16.msra.mxu0 0
    %1867 = vmatprep.subr.bf16.mxu0 0
    %1868 = vmatpush1.bf16.msra.mxu0 0
    %1869 = vmatprep.subr.bf16.mxu0 0
    %1870 = vmatpush1.bf16.msra.mxu0 0
    %1871 = vmatprep.subr.bf16.mxu0 0
    %1872 = vmatpush1.bf16.msra.mxu0 0
    %1873 = vmatprep.subr.bf16.mxu0 0
    %1874 = vmatpush1.bf16.msra.mxu0 0
    %1875 = vmatprep.subr.bf16.mxu0 0
    %1876 = vmatpush1.bf16.msra.mxu0 0
    %1877 = vmatprep.subr.bf16.mxu0 0
    %1878 = vmatpush1.bf16.msra.mxu0 0
    %1879 = vmatprep.subr.bf16.mxu0 0
    %1880 = vmatpush1.bf16.msra.mxu0 0
    %1881 = vmatprep.mubr.bf16.mxu0 0
    %1882 = vmatmul.mubr.bf16.gmra.mrb[0].mxu0 %v1679
    %v1883 = vpop.f32.mrb[0].mxu0
    %v1884 = vadd.f32 %v1796, %v1883
    %v1885 = vpop.f32.mrb[0].mxu0
    %v1886 = vpop.f32.mrb[0].mxu0
    %v1887 = vpop.f32.mrb[0].mxu0
    %1888 = vdwg.mxu0
    %v1889 = vlaneseq
    %v1890 = vshrl.u32 %v1889, 7
    %v1891 = vsub.s32 0, %v1890
    %v1892 = vrot.slane %v94, %v1891
    %v1893 = vadd.f32 %v1884, %v1892
    %1894 = vst [vmem:[#allocation11] sm:$0xff] %v1893
    // Predicated region
    $region42: #{tpu_custom_call.1} parent=1 // pred_check
      _
    $region43: #{tpu_custom_call.1} parent=1 // pred_check_branch
      %1896 = sbr.rel (0) target = $region45
    $region44: #{tpu_custom_call.1} parent=1 // pred_region
      %s1898 = ssub.s32 128, 128
      %1899 = vsyncadd [#allocation4], %s1898
      %s1901 = sshll.u32 [#allocation11], 4
      %s1902 = int_to_ptr.vmem [resolvable:$true] %s1901
      %1904 = dma.vmem_to_hbm [thread:$0]  %s1902, 128, %s5, [#allocation4]
    $region45: #{tpu_custom_call.1} parent=1 // pred_fallthru
      _
    // Predicated region
    $region46: #{tpu_custom_call.1} parent=1 // pred_check
      _
    $region47: #{tpu_custom_call.1} parent=1 // pred_check_branch
      %1906 = sbr.rel (0) target = $region49
    $region48: #{tpu_custom_call.1} parent=1 // pred_region
      %1907 = dma.done [#allocation4], 128
    $region49: #{tpu_custom_call.1} parent=1 // pred_fallthru
      _
    %1908 = vsyncpa [#allocation3], 1
    %1909 = vsyncpa [#allocation6], 1
    %1910 = vsyncpa [#allocation9], 1
    %1911 = vsyncpa [#allocation4], 1

</llo_original>
